<compile_context>
chip_gen: v7x
topology: tpu7x:2x2x1
jax: 0.10.0
libtpu: 0.0.40
codegen_flags: <defaults>
</compile_context>

<pallas_src>
import jax
import jax.numpy as jnp
from jax.experimental import pallas as pl
from jax.experimental.pallas import tpu as pltpu

_LANE = 128
_SUB = 8


def _round_up(n, m):
    return ((n + m - 1) // m) * m


def _pad2d(a, rows, cols):
    a = jnp.asarray(a, jnp.float32)
    return jnp.pad(a, ((0, rows - a.shape[0]), (0, cols - a.shape[1])))


# ------------------------------ fused kernel -------------------------------

def _make_fused_kernel(enc_dims, enc_pads, dec_dims, dec_pads, PIN, PC, PL):
    """Fused cXVAE forward for a fixed layer structure (all dims static)."""
    n_enc, n_dec = len(enc_dims), len(dec_dims)
    row_mulv = 3 * n_enc
    row_dec0 = row_mulv + 1
    row_fin = row_dec0 + 3 * n_dec

    def _ln_elu(h, d_true, d_pad, g, bt):
        # Padded lanes of h are exactly 0 (zero-padded weight cols / bias), so
        # the lane-sum mean over all d_pad lanes equals the mean over the
        # d_true valid lanes.  Two-pass variance; the padded lanes' centered
        # value is exactly (-mean), so their contribution is removed
        # analytically instead of with a mask.
        inv_d = 1.0 / float(d_true)
        mean = jnp.sum(h, axis=-1, keepdims=True) * inv_d
        hc = h - mean
        ss = jnp.sum(hc * hc, axis=-1, keepdims=True)
        if d_pad > d_true:
            ss = ss - float(d_pad - d_true) * (mean * mean)
        hn = hc * jax.lax.rsqrt(ss * inv_d + 1e-5) * g + bt
        # gamma/beta padded lanes are 0 -> hn padded lanes stay exactly 0.
        # ELU(alpha=1); clamp the discarded exp branch so it cannot overflow.
        return jnp.where(hn > 0, hn, jnp.exp(jnp.minimum(hn, 0.0)) - 1.0)

    def kernel(*refs):
        it = iter(refs)
        act_ref = next(it)                              # (TB, PIN+PC+PL)
        w_enc = [next(it) for _ in range(n_enc)]        # enc weights
        w_mulv_ref = next(it)                           # (PH[-1], 2*PL)
        w_dec = [next(it) for _ in range(n_dec)]        # dec weights
        w_fin_ref = next(it)                            # (PD[-1], PIN)
        vec_ref = next(it)                              # packed b/gamma/beta rows
        xhat_ref, mu_ref, logvar_ref = next(it), next(it), next(it)

        act = act_ref[...]
        xc = act[:, :PIN + PC]        # [x | c] slab -> single K matmul in layer 0
        c = act[:, PIN:PIN + PC]
        eps = act[:, PIN + PC:]

        def vrow(r, n):               # static slice of the packed vector block
            return vec_ref[r:r + 1, :n]

        # ----- encoder -----
        h = xc
        for li in range(n_enc):
            P = enc_pads[li]
            h = jnp.dot(h, w_enc[li][...], preferred_element_type=jnp.float32) \
                + vrow(3 * li, P)
            h = _ln_elu(h, enc_dims[li], P, vrow(3 * li + 1, P), vrow(3 * li + 2, P))

        # ----- merged fc21/fc22 heads + reparameterization -----
        hm = jnp.dot(h, w_mulv_ref[...], preferred_element_type=jnp.float32) \
             + vrow(row_mulv, 2 * PL)
        mu = hm[:, :PL]
        logvar = hm[:, PL:]
        z = mu + eps * jnp.exp(0.5 * logvar)     # padded lanes of eps/mu/logvar are 0

        # ----- decoder: layer 0 splits the K-stacked [Wz; Wc] weight (no z|c concat copy)
        P0 = dec_pads[0]
        hd = (jnp.dot(z, w_dec[0][:PL, :], preferred_element_type=jnp.float32)
              + jnp.dot(c, w_dec[0][PL:, :], preferred_element_type=jnp.float32)
              + vrow(row_dec0, P0))
        hd = _ln_elu(hd, dec_dims[0], P0, vrow(row_dec0 + 1, P0), vrow(row_dec0 + 2, P0))
        for li in range(1, n_dec):
            P = dec_pads[li]
            r = row_dec0 + 3 * li
            hd = jnp.dot(hd, w_dec[li][...], preferred_element_type=jnp.float32) \
                 + vrow(r, P)
            hd = _ln_elu(hd, dec_dims[li], P, vrow(r + 1, P), vrow(r + 2, P))

        xhat_ref[...] = (jnp.dot(hd, w_fin_ref[...], preferred_element_type=jnp.float32)
                         + vrow(row_fin, PIN))
        mu_ref[...] = mu
        logvar_ref[...] = logvar

    return kernel


# --------------------------- parameter creation ----------------------------

def _init_linear(key, d_in, d_out):
    kw, kb = jax.random.split(key)
    bound = 1.0 / (d_in ** 0.5)
    w = jax.random.uniform(kw, (d_in, d_out), jnp.float32, -bound, bound)
    b = jax.random.uniform(kb, (1, d_out), jnp.float32, -bound, bound)
    return w, b


def build_cxvae(rng, input_dim_dict, cond_dim, hidden_dims, latent_dim):
    PC = _round_up(cond_dim, _LANE)
    PL = _round_up(latent_dim, _LANE)
    enc_hidden = list(hidden_dims)
    dec_hidden = list(reversed(hidden_dims))
    PH = [_round_up(h, _LANE) for h in enc_hidden]
    PD = [_round_up(h, _LANE) for h in dec_hidden]
    n_enc, n_dec = len(enc_hidden), len(dec_hidden)

    # Shared heads fc21/fc22, merged along N into one lane-dense weight.
    rng, k21, k22 = jax.random.split(rng, 3)
    w21, b21 = _init_linear(k21, enc_hidden[-1], latent_dim)
    w22, b22 = _init_linear(k22, enc_hidden[-1], latent_dim)
    w_mulv = jnp.concatenate([_pad2d(w21, PH[-1], PL), _pad2d(w22, PH[-1], PL)], axis=1)
    b_mulv = jnp.concatenate([_pad2d(b21, 1, PL), _pad2d(b22, 1, PL)], axis=1)

    model = {"cond_dim": cond_dim, "latent_dim": latent_dim, "PC": PC, "PL": PL,
             "logical_fc": {"w21": w21, "b21": b21, "w22": w22, "b22": b22},
             "modalities": {}}

    for name, input_dim in input_dim_dict.items():
        PIN = _round_up(input_dim, _LANE)
        maxN = max(PH + PD + [PIN, 2 * PL])
        weights, vec_rows = [], []
        enc_log, dec_log = [], []

        def add_vec(a):
            a = jnp.asarray(a, jnp.float32).reshape(1, -1)
            vec_rows.append(jnp.pad(a, ((0, 0), (0, maxN - a.shape[1]))))

        # ---- encoder layer 0: K-stacked [Wx; Wc] so the kernel does one K matmul
        rng, k = jax.random.split(rng)
        w, b = _init_linear(k, input_dim + cond_dim, enc_hidden[0])
        g = jnp.ones((1, enc_hidden[0]), jnp.float32)
        bt = jnp.zeros((1, enc_hidden[0]), jnp.float32)
        enc_log.append((w, b, g, bt))
        w0 = jnp.zeros((PIN + PC, PH[0]), jnp.float32)
        w0 = w0.at[:input_dim, :enc_hidden[0]].set(w[:input_dim])
        w0 = w0.at[PIN:PIN + cond_dim, :enc_hidden[0]].set(w[input_dim:])
        weights.append(w0)
        add_vec(b); add_vec(g); add_vec(bt)

        for li in range(1, n_enc):
            rng, k = jax.random.split(rng)
            w, b = _init_linear(k, enc_hidden[li - 1], enc_hidden[li])
            g = jnp.ones((1, enc_hidden[li]), jnp.float32)
            bt = jnp.zeros((1, enc_hidden[li]), jnp.float32)
            enc_log.append((w, b, g, bt))
            weights.append(_pad2d(w, PH[li - 1], PH[li]))
            add_vec(b); add_vec(g); add_vec(bt)

        # ---- fc21/fc22 (shared across modalities, like the torch module) ----
        weights.append(w_mulv)
        add_vec(b_mulv)

        # ---- decoder layer 0: K-stacked [Wz; Wc], split in-kernel ----
        rng, k = jax.random.split(rng)
        w, b = _init_linear(k, latent_dim + cond_dim, dec_hidden[0])
        g = jnp.ones((1, dec_hidden[0]), jnp.float32)
        bt = jnp.zeros((1, dec_hidden[0]), jnp.float32)
        dec_log.append((w, b, g, bt))
        wd0 = jnp.zeros((PL + PC, PD[0]), jnp.float32)
        wd0 = wd0.at[:latent_dim, :dec_hidden[0]].set(w[:latent_dim])
        wd0 = wd0.at[PL:PL + cond_dim, :dec_hidden[0]].set(w[latent_dim:])
        weights.append(wd0)
        add_vec(b); add_vec(g); add_vec(bt)

        for li in range(1, n_dec):
            rng, k = jax.random.split(rng)
            w, b = _init_linear(k, dec_hidden[li - 1], dec_hidden[li])
            g = jnp.ones((1, dec_hidden[li]), jnp.float32)
            bt = jnp.zeros((1, dec_hidden[li]), jnp.float32)
            dec_log.append((w, b, g, bt))
            weights.append(_pad2d(w, PD[li - 1], PD[li]))
            add_vec(b); add_vec(g); add_vec(bt)

        rng, k = jax.random.split(rng)
        w_fin, b_fin = _init_linear(k, dec_hidden[-1], input_dim)
        weights.append(_pad2d(w_fin, PD[-1], PIN))
        add_vec(b_fin)

        # Pack ALL small vectors into one (rows, maxN) VMEM block (one input ref).
        vec = jnp.concatenate(vec_rows, axis=0)
        vec = jnp.pad(vec, ((0, _round_up(vec.shape[0], _SUB) - vec.shape[0]), (0, 0)))
        weights.append(vec)

        model["modalities"][name] = {
            "input_dim": input_dim, "PIN": PIN, "weights": weights,
            "kernel": _make_fused_kernel(tuple(enc_hidden), tuple(PH),
                                         tuple(dec_hidden), tuple(PD),
                                         PIN, PC, PL),
            "logical": {"enc": enc_log, "dec": dec_log, "final": (w_fin, b_fin)},
        }
    return model


# ------------------------------ forward pass -------------------------------

def make_forward(model, key, *, single_buffer_weights=True):
    """Returns a jitted forward(x, c, eps) for one modality (pad+kernel+slice fused)."""
    mod = model["modalities"][key]
    PIN, PC, PL = mod["PIN"], model["PC"], model["PL"]
    PACT = PIN + PC + PL
    weights = mod["weights"]
    kernel = mod["kernel"]
    input_dim, latent_dim = mod["input_dim"], model["latent_dim"]

    def _const_spec(shape):
        idx = lambda i: (0, 0)
        if single_buffer_weights and hasattr(pl, "Buffered"):
            try:
                # Constant-index weights never need a second buffer.
                return pl.BlockSpec(shape, idx, pipeline_mode=pl.Buffered(1))
            except Exception:
                pass
        return pl.BlockSpec(shape, idx)

    @jax.jit
    def _fwd(x, c, eps):
        B = x.shape[0]
        B8 = _round_up(max(B, 1), _SUB)
        if B8 <= _SUB:
            TB = B8
        else:
            # >=2 grid steps so "parallel" megacore sharding can use both v7x TCs;
            # cap the block at 512 rows to amortize per-step overhead at big B.
            TB = min(512, _round_up((B8 + 1) // 2, _SUB))
        B_pad = _round_up(B8, TB)

        # Single lane-dense activation slab: [ x | c | eps ].
        act = jnp.concatenate([_pad2d(x, B_pad, PIN),
                               _pad2d(c, B_pad, PC),
                               _pad2d(eps, B_pad, PL)], axis=1)

        in_specs = [pl.BlockSpec((TB, PACT), lambda i: (i, 0))]
        in_specs += [_const_spec(w.shape) for w in weights]
        out_shapes = (jax.ShapeDtypeStruct((B_pad, PIN), jnp.float32),
                      jax.ShapeDtypeStruct((B_pad, PL), jnp.float32),
                      jax.ShapeDtypeStruct((B_pad, PL), jnp.float32))
        out_specs = (pl.BlockSpec((TB, PIN), lambda i: (i, 0)),
                     pl.BlockSpec((TB, PL), lambda i: (i, 0)),
                     pl.BlockSpec((TB, PL), lambda i: (i, 0)))

        # Data-driven VMEM limit: weights (x2 in case single-buffering is
        # unavailable) + double-buffered activation/output blocks + headroom.
        # TODO(synk): once resident weights exceed ~24-28 MiB (v7x 64 MiB VMEM),
        # stream decoder-half weights with a second grid axis instead.
        w_bytes = sum(int(w.size) * 4 for w in weights)
        io_bytes = (TB * PACT + TB * (PIN + 2 * PL)) * 4
        vmem_limit = min(64 * 1024 * 1024,
                         max(32 * 1024 * 1024, 2 * w_bytes + 4 * io_bytes + (4 << 20)))

        xhat_p, mu_p, logvar_p = pl.pallas_call(
            kernel,
            grid_spec=pltpu.PrefetchScalarGridSpec(
                num_scalar_prefetch=0,
                grid=(B_pad // TB,),
                in_specs=in_specs,
                out_specs=out_specs),
            out_shape=out_shapes,
            compiler_params=pltpu.CompilerParams(
                dimension_semantics=("parallel",),
                vmem_limit_bytes=int(vmem_limit)),
        )(act, *weights)

        return (xhat_p[:B, :input_dim], mu_p[:B, :latent_dim], logvar_p[:B, :latent_dim])

    def fwd(x, c, eps):
        xhat, mu, logvar = _fwd(x, c, eps)
        return {"xhat": xhat, "mu": mu, "logvar": logvar, "key": key}

    return fwd


# --------------------------- pure-JAX reference -----------------------------

def _reference_forward(model, x, c, key, eps):
    def ln(h, g, bt):
        mean = h.mean(-1, keepdims=True)
        var = ((h - mean) ** 2).mean(-1, keepdims=True)
        return (h - mean) / jnp.sqrt(var + 1e-5) * g + bt

    def elu(v):
        return jnp.where(v > 0, v, jnp.exp(jnp.minimum(v, 0.0)) - 1.0)

    lg = model["modalities"][key]["logical"]
    fc = model["logical_fc"]
    h = jnp.concatenate([x, c], axis=1)
    for (w, b, g, bt) in lg["enc"]:
        h = elu(ln(h @ w + b, g, bt))
    mu = h @ fc["w21"] + fc["b21"]
    logvar = h @ fc["w22"] + fc["b22"]
    z = mu + eps * jnp.exp(0.5 * logvar)
    hd = jnp.concatenate([z, c], axis=1)
    for (w, b, g, bt) in lg["dec"]:
        hd = elu(ln(hd @ w + b, g, bt))
    w_fin, b_fin = lg["final"]
    return hd @ w_fin + b_fin, mu, logvar


# ---------------------------------- main -----------------------------------

if __name__ == "__main__":
    batch = 8
    input_dim_dict = {"expr": 16}
    cond_dim = 4
    hidden_dims = [32, 16]
    latent_dim = 8
    modality = "expr"

    root = jax.random.PRNGKey(0)
    k_params, k_x, k_c, k_eps = jax.random.split(root, 4)

    model = build_cxvae(k_params, input_dim_dict, cond_dim, hidden_dims, latent_dim)

    x = jax.random.normal(k_x, (batch, input_dim_dict[modality]), jnp.float32)
    c = jax.random.normal(k_c, (batch, cond_dim), jnp.float32)
    # TODO(synk): eps could be drawn in-kernel (pltpu.prng_seed + stateful normal);
    # kept as an explicit input so the fused kernel stays bit-checkable vs the reference.
    eps = jax.random.normal(k_eps, (batch, latent_dim), jnp.float32)

    try:
        fwd = make_forward(model, modality, single_buffer_weights=True)
        out = fwd(x, c, eps)
        jax.block_until_ready((out["xhat"], out["mu"], out["logvar"]))
    except Exception:
        # Fallback if this JAX build rejects pl.Buffered(1) on input BlockSpecs.
        fwd = make_forward(model, modality, single_buffer_weights=False)
        out = fwd(x, c, eps)
        jax.block_until_ready((out["xhat"], out["mu"], out["logvar"]))

    assert out["xhat"].shape == (batch, input_dim_dict[modality])
    assert out["mu"].shape == (batch, latent_dim)
    assert out["logvar"].shape == (batch, latent_dim)
    assert out["key"] == modality

    ref_xhat, ref_mu, ref_logvar = _reference_forward(model, x, c, modality, eps)
    assert jnp.allclose(out["mu"], ref_mu, atol=2e-4, rtol=2e-4)
    assert jnp.allclose(out["logvar"], ref_logvar, atol=2e-4, rtol=2e-4)
    assert jnp.allclose(out["xhat"], ref_xhat, atol=2e-4, rtol=2e-4)

    print("KERNEL_OK")
</pallas_src>

<mosaic_0001>
module attributes {stable_mosaic.version = 11 : i64} {
  func.func @kernel(%arg0: i32, %arg1: memref<8x384xf32, #tpu.memory_space<vmem>>, %arg2: memref<256x128xf32, #tpu.memory_space<vmem>>, %arg3: memref<128x128xf32, #tpu.memory_space<vmem>>, %arg4: memref<128x256xf32, #tpu.memory_space<vmem>>, %arg5: memref<256x128xf32, #tpu.memory_space<vmem>>, %arg6: memref<128x128xf32, #tpu.memory_space<vmem>>, %arg7: memref<128x128xf32, #tpu.memory_space<vmem>>, %arg8: memref<16x256xf32, #tpu.memory_space<vmem>>, %arg9: memref<8x128xf32, #tpu.memory_space<vmem>>, %arg10: memref<8x128xf32, #tpu.memory_space<vmem>>, %arg11: memref<8x128xf32, #tpu.memory_space<vmem>>) attributes {dimension_semantics = [#tpu.dimension_semantics<parallel>], iteration_bounds = array<i64: 1>, scalar_prefetch = 0 : i64, scratch_operands = 0 : i64, tpu.core_type = #tpu.core_type<tc>, window_params = [{transform_indices = @transform_0, window_bounds = array<i64: 8, 384>}, {pipeline_mode = #tpu.pipeline_mode<synchronous>, transform_indices = @transform_1, window_bounds = array<i64: 256, 128>}, {pipeline_mode = #tpu.pipeline_mode<synchronous>, transform_indices = @transform_2, window_bounds = array<i64: 128, 128>}, {pipeline_mode = #tpu.pipeline_mode<synchronous>, transform_indices = @transform_3, window_bounds = array<i64: 128, 256>}, {pipeline_mode = #tpu.pipeline_mode<synchronous>, transform_indices = @transform_4, window_bounds = array<i64: 256, 128>}, {pipeline_mode = #tpu.pipeline_mode<synchronous>, transform_indices = @transform_5, window_bounds = array<i64: 128, 128>}, {pipeline_mode = #tpu.pipeline_mode<synchronous>, transform_indices = @transform_6, window_bounds = array<i64: 128, 128>}, {pipeline_mode = #tpu.pipeline_mode<synchronous>, transform_indices = @transform_7, window_bounds = array<i64: 16, 256>}, {transform_indices = @transform_8, window_bounds = array<i64: 8, 128>}, {transform_indices = @transform_9, window_bounds = array<i64: 8, 128>}, {transform_indices = @transform_10, window_bounds = array<i64: 8, 128>}]} {
    %c0 = arith.constant 0 : index
    %c0_0 = arith.constant 0 : index
    %0 = vector.load %arg1[%c0, %c0_0] : memref<8x384xf32, #tpu.memory_space<vmem>>, vector<8x384xf32>
    %1 = vector.extract_strided_slice %0 {offsets = [0, 0], sizes = [8, 256], strides = [1, 1]} : vector<8x384xf32> to vector<8x256xf32>
    %2 = vector.extract_strided_slice %0 {offsets = [0, 128], sizes = [8, 128], strides = [1, 1]} : vector<8x384xf32> to vector<8x128xf32>
    %3 = vector.extract_strided_slice %0 {offsets = [0, 256], sizes = [8, 128], strides = [1, 1]} : vector<8x384xf32> to vector<8x128xf32>
    %c0_1 = arith.constant 0 : index
    %c0_2 = arith.constant 0 : index
    %4 = vector.load %arg2[%c0_1, %c0_2] : memref<256x128xf32, #tpu.memory_space<vmem>>, vector<256x128xf32>
    %cst = arith.constant dense<0.000000e+00> : vector<8x128xf32>
    %5 = tpu.matmul %1, %4, %cst {dimension_numbers = #tpu.dot_dimension_numbers<[1], [0], [0], [1], [0, 0, 1, 1], [], []>} : vector<8x256xf32>, vector<256x128xf32>, vector<8x128xf32> -> vector<8x128xf32>
    %c0_3 = arith.constant 0 : index
    %c0_4 = arith.constant 0 : index
    %6 = vector.load %arg8[%c0_3, %c0_4] : memref<16x256xf32, #tpu.memory_space<vmem>>, vector<1x128xf32>
    %7 = vector.broadcast %6 : vector<1x128xf32> to vector<8x128xf32>
    %8 = arith.addf %5, %7 : vector<8x128xf32>
    %c1 = arith.constant 1 : index
    %c0_5 = arith.constant 0 : index
    %9 = vector.load %arg8[%c1, %c0_5] : memref<16x256xf32, #tpu.memory_space<vmem>>, vector<1x128xf32>
    %c2 = arith.constant 2 : index
    %c0_6 = arith.constant 0 : index
    %10 = vector.load %arg8[%c2, %c0_6] : memref<16x256xf32, #tpu.memory_space<vmem>>, vector<1x128xf32>
    %cst_7 = arith.constant dense<0.000000e+00> : vector<8xf32>
    %11 = vector.multi_reduction <add>, %8, %cst_7 [1] : vector<8x128xf32> to vector<8xf32>
    %12 = vector.shape_cast %11 : vector<8xf32> to vector<8x1xf32>
    %cst_8 = arith.constant 3.125000e-02 : f32
    %13 = vector.broadcast %cst_8 : f32 to vector<8x1xf32>
    %14 = arith.mulf %12, %13 : vector<8x1xf32>
    %15 = vector.broadcast %14 : vector<8x1xf32> to vector<8x128xf32>
    %16 = arith.subf %8, %15 : vector<8x128xf32>
    %17 = arith.mulf %16, %16 : vector<8x128xf32>
    %cst_9 = arith.constant dense<0.000000e+00> : vector<8xf32>
    %18 = vector.multi_reduction <add>, %17, %cst_9 [1] : vector<8x128xf32> to vector<8xf32>
    %19 = vector.shape_cast %18 : vector<8xf32> to vector<8x1xf32>
    %20 = arith.mulf %14, %14 : vector<8x1xf32>
    %cst_10 = arith.constant 9.600000e+01 : f32
    %21 = vector.broadcast %cst_10 : f32 to vector<8x1xf32>
    %22 = arith.mulf %21, %20 : vector<8x1xf32>
    %23 = arith.subf %19, %22 : vector<8x1xf32>
    %cst_11 = arith.constant 3.125000e-02 : f32
    %24 = vector.broadcast %cst_11 : f32 to vector<8x1xf32>
    %25 = arith.mulf %23, %24 : vector<8x1xf32>
    %cst_12 = arith.constant 9.99999974E-6 : f32
    %26 = vector.broadcast %cst_12 : f32 to vector<8x1xf32>
    %27 = arith.addf %25, %26 : vector<8x1xf32>
    %28 = math.rsqrt %27 : vector<8x1xf32>
    %29 = vector.broadcast %28 : vector<8x1xf32> to vector<8x128xf32>
    %30 = arith.mulf %16, %29 : vector<8x128xf32>
    %31 = vector.broadcast %9 : vector<1x128xf32> to vector<8x128xf32>
    %32 = arith.mulf %30, %31 : vector<8x128xf32>
    %33 = vector.broadcast %10 : vector<1x128xf32> to vector<8x128xf32>
    %34 = arith.addf %32, %33 : vector<8x128xf32>
    %cst_13 = arith.constant 0.000000e+00 : f32
    %35 = vector.broadcast %cst_13 : f32 to vector<8x128xf32>
    %36 = arith.cmpf ogt, %34, %35 : vector<8x128xf32>
    %cst_14 = arith.constant 0.000000e+00 : f32
    %37 = vector.broadcast %cst_14 : f32 to vector<8x128xf32>
    %38 = arith.minimumf %34, %37 : vector<8x128xf32>
    %39 = math.exp %38 : vector<8x128xf32>
    %cst_15 = arith.constant 1.000000e+00 : f32
    %40 = vector.broadcast %cst_15 : f32 to vector<8x128xf32>
    %41 = arith.subf %39, %40 : vector<8x128xf32>
    %42 = arith.select %36, %34, %41 : vector<8x128xi1>, vector<8x128xf32>
    %c0_16 = arith.constant 0 : index
    %c0_17 = arith.constant 0 : index
    %43 = vector.load %arg3[%c0_16, %c0_17] : memref<128x128xf32, #tpu.memory_space<vmem>>, vector<128x128xf32>
    %cst_18 = arith.constant dense<0.000000e+00> : vector<8x128xf32>
    %44 = tpu.matmul %42, %43, %cst_18 {dimension_numbers = #tpu.dot_dimension_numbers<[1], [0], [0], [1], [0, 0, 1, 1], [], []>} : vector<8x128xf32>, vector<128x128xf32>, vector<8x128xf32> -> vector<8x128xf32>
    %c3 = arith.constant 3 : index
    %c0_19 = arith.constant 0 : index
    %45 = vector.load %arg8[%c3, %c0_19] : memref<16x256xf32, #tpu.memory_space<vmem>>, vector<1x128xf32>
    %46 = vector.broadcast %45 : vector<1x128xf32> to vector<8x128xf32>
    %47 = arith.addf %44, %46 : vector<8x128xf32>
    %c4 = arith.constant 4 : index
    %c0_20 = arith.constant 0 : index
    %48 = vector.load %arg8[%c4, %c0_20] : memref<16x256xf32, #tpu.memory_space<vmem>>, vector<1x128xf32>
    %c5 = arith.constant 5 : index
    %c0_21 = arith.constant 0 : index
    %49 = vector.load %arg8[%c5, %c0_21] : memref<16x256xf32, #tpu.memory_space<vmem>>, vector<1x128xf32>
    %cst_22 = arith.constant dense<0.000000e+00> : vector<8xf32>
    %50 = vector.multi_reduction <add>, %47, %cst_22 [1] : vector<8x128xf32> to vector<8xf32>
    %51 = vector.shape_cast %50 : vector<8xf32> to vector<8x1xf32>
    %cst_23 = arith.constant 6.250000e-02 : f32
    %52 = vector.broadcast %cst_23 : f32 to vector<8x1xf32>
    %53 = arith.mulf %51, %52 : vector<8x1xf32>
    %54 = vector.broadcast %53 : vector<8x1xf32> to vector<8x128xf32>
    %55 = arith.subf %47, %54 : vector<8x128xf32>
    %56 = arith.mulf %55, %55 : vector<8x128xf32>
    %cst_24 = arith.constant dense<0.000000e+00> : vector<8xf32>
    %57 = vector.multi_reduction <add>, %56, %cst_24 [1] : vector<8x128xf32> to vector<8xf32>
    %58 = vector.shape_cast %57 : vector<8xf32> to vector<8x1xf32>
    %59 = arith.mulf %53, %53 : vector<8x1xf32>
    %cst_25 = arith.constant 1.120000e+02 : f32
    %60 = vector.broadcast %cst_25 : f32 to vector<8x1xf32>
    %61 = arith.mulf %60, %59 : vector<8x1xf32>
    %62 = arith.subf %58, %61 : vector<8x1xf32>
    %cst_26 = arith.constant 6.250000e-02 : f32
    %63 = vector.broadcast %cst_26 : f32 to vector<8x1xf32>
    %64 = arith.mulf %62, %63 : vector<8x1xf32>
    %cst_27 = arith.constant 9.99999974E-6 : f32
    %65 = vector.broadcast %cst_27 : f32 to vector<8x1xf32>
    %66 = arith.addf %64, %65 : vector<8x1xf32>
    %67 = math.rsqrt %66 : vector<8x1xf32>
    %68 = vector.broadcast %67 : vector<8x1xf32> to vector<8x128xf32>
    %69 = arith.mulf %55, %68 : vector<8x128xf32>
    %70 = vector.broadcast %48 : vector<1x128xf32> to vector<8x128xf32>
    %71 = arith.mulf %69, %70 : vector<8x128xf32>
    %72 = vector.broadcast %49 : vector<1x128xf32> to vector<8x128xf32>
    %73 = arith.addf %71, %72 : vector<8x128xf32>
    %cst_28 = arith.constant 0.000000e+00 : f32
    %74 = vector.broadcast %cst_28 : f32 to vector<8x128xf32>
    %75 = arith.cmpf ogt, %73, %74 : vector<8x128xf32>
    %cst_29 = arith.constant 0.000000e+00 : f32
    %76 = vector.broadcast %cst_29 : f32 to vector<8x128xf32>
    %77 = arith.minimumf %73, %76 : vector<8x128xf32>
    %78 = math.exp %77 : vector<8x128xf32>
    %cst_30 = arith.constant 1.000000e+00 : f32
    %79 = vector.broadcast %cst_30 : f32 to vector<8x128xf32>
    %80 = arith.subf %78, %79 : vector<8x128xf32>
    %81 = arith.select %75, %73, %80 : vector<8x128xi1>, vector<8x128xf32>
    %c0_31 = arith.constant 0 : index
    %c0_32 = arith.constant 0 : index
    %82 = vector.load %arg4[%c0_31, %c0_32] : memref<128x256xf32, #tpu.memory_space<vmem>>, vector<128x256xf32>
    %cst_33 = arith.constant dense<0.000000e+00> : vector<8x256xf32>
    %83 = tpu.matmul %81, %82, %cst_33 {dimension_numbers = #tpu.dot_dimension_numbers<[1], [0], [0], [1], [0, 0, 1, 1], [], []>} : vector<8x128xf32>, vector<128x256xf32>, vector<8x256xf32> -> vector<8x256xf32>
    %c6 = arith.constant 6 : index
    %c0_34 = arith.constant 0 : index
    %84 = vector.load %arg8[%c6, %c0_34] : memref<16x256xf32, #tpu.memory_space<vmem>>, vector<1x256xf32>
    %85 = vector.broadcast %84 : vector<1x256xf32> to vector<8x256xf32>
    %86 = arith.addf %83, %85 : vector<8x256xf32>
    %87 = vector.extract_strided_slice %86 {offsets = [0, 0], sizes = [8, 128], strides = [1, 1]} : vector<8x256xf32> to vector<8x128xf32>
    %88 = vector.extract_strided_slice %86 {offsets = [0, 128], sizes = [8, 128], strides = [1, 1]} : vector<8x256xf32> to vector<8x128xf32>
    %cst_35 = arith.constant 5.000000e-01 : f32
    %89 = vector.broadcast %cst_35 : f32 to vector<8x128xf32>
    %90 = arith.mulf %89, %88 : vector<8x128xf32>
    %91 = math.exp %90 : vector<8x128xf32>
    %92 = arith.mulf %3, %91 : vector<8x128xf32>
    %93 = arith.addf %87, %92 : vector<8x128xf32>
    %c0_36 = arith.constant 0 : index
    %c0_37 = arith.constant 0 : index
    %94 = vector.load %arg5[%c0_36, %c0_37] : memref<256x128xf32, #tpu.memory_space<vmem>>, vector<128x128xf32>
    %cst_38 = arith.constant dense<0.000000e+00> : vector<8x128xf32>
    %95 = tpu.matmul %93, %94, %cst_38 {dimension_numbers = #tpu.dot_dimension_numbers<[1], [0], [0], [1], [0, 0, 1, 1], [], []>} : vector<8x128xf32>, vector<128x128xf32>, vector<8x128xf32> -> vector<8x128xf32>
    %c128 = arith.constant 128 : index
    %c0_39 = arith.constant 0 : index
    %96 = vector.load %arg5[%c128, %c0_39] : memref<256x128xf32, #tpu.memory_space<vmem>>, vector<128x128xf32>
    %cst_40 = arith.constant dense<0.000000e+00> : vector<8x128xf32>
    %97 = tpu.matmul %2, %96, %cst_40 {dimension_numbers = #tpu.dot_dimension_numbers<[1], [0], [0], [1], [0, 0, 1, 1], [], []>} : vector<8x128xf32>, vector<128x128xf32>, vector<8x128xf32> -> vector<8x128xf32>
    %98 = arith.addf %95, %97 : vector<8x128xf32>
    %c7 = arith.constant 7 : index
    %c0_41 = arith.constant 0 : index
    %99 = vector.load %arg8[%c7, %c0_41] : memref<16x256xf32, #tpu.memory_space<vmem>>, vector<1x128xf32>
    %100 = vector.broadcast %99 : vector<1x128xf32> to vector<8x128xf32>
    %101 = arith.addf %98, %100 : vector<8x128xf32>
    %c8 = arith.constant 8 : index
    %c0_42 = arith.constant 0 : index
    %102 = vector.load %arg8[%c8, %c0_42] : memref<16x256xf32, #tpu.memory_space<vmem>>, vector<1x128xf32>
    %c9 = arith.constant 9 : index
    %c0_43 = arith.constant 0 : index
    %103 = vector.load %arg8[%c9, %c0_43] : memref<16x256xf32, #tpu.memory_space<vmem>>, vector<1x128xf32>
    %cst_44 = arith.constant dense<0.000000e+00> : vector<8xf32>
    %104 = vector.multi_reduction <add>, %101, %cst_44 [1] : vector<8x128xf32> to vector<8xf32>
    %105 = vector.shape_cast %104 : vector<8xf32> to vector<8x1xf32>
    %cst_45 = arith.constant 6.250000e-02 : f32
    %106 = vector.broadcast %cst_45 : f32 to vector<8x1xf32>
    %107 = arith.mulf %105, %106 : vector<8x1xf32>
    %108 = vector.broadcast %107 : vector<8x1xf32> to vector<8x128xf32>
    %109 = arith.subf %101, %108 : vector<8x128xf32>
    %110 = arith.mulf %109, %109 : vector<8x128xf32>
    %cst_46 = arith.constant dense<0.000000e+00> : vector<8xf32>
    %111 = vector.multi_reduction <add>, %110, %cst_46 [1] : vector<8x128xf32> to vector<8xf32>
    %112 = vector.shape_cast %111 : vector<8xf32> to vector<8x1xf32>
    %113 = arith.mulf %107, %107 : vector<8x1xf32>
    %cst_47 = arith.constant 1.120000e+02 : f32
    %114 = vector.broadcast %cst_47 : f32 to vector<8x1xf32>
    %115 = arith.mulf %114, %113 : vector<8x1xf32>
    %116 = arith.subf %112, %115 : vector<8x1xf32>
    %cst_48 = arith.constant 6.250000e-02 : f32
    %117 = vector.broadcast %cst_48 : f32 to vector<8x1xf32>
    %118 = arith.mulf %116, %117 : vector<8x1xf32>
    %cst_49 = arith.constant 9.99999974E-6 : f32
    %119 = vector.broadcast %cst_49 : f32 to vector<8x1xf32>
    %120 = arith.addf %118, %119 : vector<8x1xf32>
    %121 = math.rsqrt %120 : vector<8x1xf32>
    %122 = vector.broadcast %121 : vector<8x1xf32> to vector<8x128xf32>
    %123 = arith.mulf %109, %122 : vector<8x128xf32>
    %124 = vector.broadcast %102 : vector<1x128xf32> to vector<8x128xf32>
    %125 = arith.mulf %123, %124 : vector<8x128xf32>
    %126 = vector.broadcast %103 : vector<1x128xf32> to vector<8x128xf32>
    %127 = arith.addf %125, %126 : vector<8x128xf32>
    %cst_50 = arith.constant 0.000000e+00 : f32
    %128 = vector.broadcast %cst_50 : f32 to vector<8x128xf32>
    %129 = arith.cmpf ogt, %127, %128 : vector<8x128xf32>
    %cst_51 = arith.constant 0.000000e+00 : f32
    %130 = vector.broadcast %cst_51 : f32 to vector<8x128xf32>
    %131 = arith.minimumf %127, %130 : vector<8x128xf32>
    %132 = math.exp %131 : vector<8x128xf32>
    %cst_52 = arith.constant 1.000000e+00 : f32
    %133 = vector.broadcast %cst_52 : f32 to vector<8x128xf32>
    %134 = arith.subf %132, %133 : vector<8x128xf32>
    %135 = arith.select %129, %127, %134 : vector<8x128xi1>, vector<8x128xf32>
    %c0_53 = arith.constant 0 : index
    %c0_54 = arith.constant 0 : index
    %136 = vector.load %arg6[%c0_53, %c0_54] : memref<128x128xf32, #tpu.memory_space<vmem>>, vector<128x128xf32>
    %cst_55 = arith.constant dense<0.000000e+00> : vector<8x128xf32>
    %137 = tpu.matmul %135, %136, %cst_55 {dimension_numbers = #tpu.dot_dimension_numbers<[1], [0], [0], [1], [0, 0, 1, 1], [], []>} : vector<8x128xf32>, vector<128x128xf32>, vector<8x128xf32> -> vector<8x128xf32>
    %c10 = arith.constant 10 : index
    %c0_56 = arith.constant 0 : index
    %138 = vector.load %arg8[%c10, %c0_56] : memref<16x256xf32, #tpu.memory_space<vmem>>, vector<1x128xf32>
    %139 = vector.broadcast %138 : vector<1x128xf32> to vector<8x128xf32>
    %140 = arith.addf %137, %139 : vector<8x128xf32>
    %c11 = arith.constant 11 : index
    %c0_57 = arith.constant 0 : index
    %141 = vector.load %arg8[%c11, %c0_57] : memref<16x256xf32, #tpu.memory_space<vmem>>, vector<1x128xf32>
    %c12 = arith.constant 12 : index
    %c0_58 = arith.constant 0 : index
    %142 = vector.load %arg8[%c12, %c0_58] : memref<16x256xf32, #tpu.memory_space<vmem>>, vector<1x128xf32>
    %cst_59 = arith.constant dense<0.000000e+00> : vector<8xf32>
    %143 = vector.multi_reduction <add>, %140, %cst_59 [1] : vector<8x128xf32> to vector<8xf32>
    %144 = vector.shape_cast %143 : vector<8xf32> to vector<8x1xf32>
    %cst_60 = arith.constant 3.125000e-02 : f32
    %145 = vector.broadcast %cst_60 : f32 to vector<8x1xf32>
    %146 = arith.mulf %144, %145 : vector<8x1xf32>
    %147 = vector.broadcast %146 : vector<8x1xf32> to vector<8x128xf32>
    %148 = arith.subf %140, %147 : vector<8x128xf32>
    %149 = arith.mulf %148, %148 : vector<8x128xf32>
    %cst_61 = arith.constant dense<0.000000e+00> : vector<8xf32>
    %150 = vector.multi_reduction <add>, %149, %cst_61 [1] : vector<8x128xf32> to vector<8xf32>
    %151 = vector.shape_cast %150 : vector<8xf32> to vector<8x1xf32>
    %152 = arith.mulf %146, %146 : vector<8x1xf32>
    %cst_62 = arith.constant 9.600000e+01 : f32
    %153 = vector.broadcast %cst_62 : f32 to vector<8x1xf32>
    %154 = arith.mulf %153, %152 : vector<8x1xf32>
    %155 = arith.subf %151, %154 : vector<8x1xf32>
    %cst_63 = arith.constant 3.125000e-02 : f32
    %156 = vector.broadcast %cst_63 : f32 to vector<8x1xf32>
    %157 = arith.mulf %155, %156 : vector<8x1xf32>
    %cst_64 = arith.constant 9.99999974E-6 : f32
    %158 = vector.broadcast %cst_64 : f32 to vector<8x1xf32>
    %159 = arith.addf %157, %158 : vector<8x1xf32>
    %160 = math.rsqrt %159 : vector<8x1xf32>
    %161 = vector.broadcast %160 : vector<8x1xf32> to vector<8x128xf32>
    %162 = arith.mulf %148, %161 : vector<8x128xf32>
    %163 = vector.broadcast %141 : vector<1x128xf32> to vector<8x128xf32>
    %164 = arith.mulf %162, %163 : vector<8x128xf32>
    %165 = vector.broadcast %142 : vector<1x128xf32> to vector<8x128xf32>
    %166 = arith.addf %164, %165 : vector<8x128xf32>
    %cst_65 = arith.constant 0.000000e+00 : f32
    %167 = vector.broadcast %cst_65 : f32 to vector<8x128xf32>
    %168 = arith.cmpf ogt, %166, %167 : vector<8x128xf32>
    %cst_66 = arith.constant 0.000000e+00 : f32
    %169 = vector.broadcast %cst_66 : f32 to vector<8x128xf32>
    %170 = arith.minimumf %166, %169 : vector<8x128xf32>
    %171 = math.exp %170 : vector<8x128xf32>
    %cst_67 = arith.constant 1.000000e+00 : f32
    %172 = vector.broadcast %cst_67 : f32 to vector<8x128xf32>
    %173 = arith.subf %171, %172 : vector<8x128xf32>
    %174 = arith.select %168, %166, %173 : vector<8x128xi1>, vector<8x128xf32>
    %c0_68 = arith.constant 0 : index
    %c0_69 = arith.constant 0 : index
    %175 = vector.load %arg7[%c0_68, %c0_69] : memref<128x128xf32, #tpu.memory_space<vmem>>, vector<128x128xf32>
    %cst_70 = arith.constant dense<0.000000e+00> : vector<8x128xf32>
    %176 = tpu.matmul %174, %175, %cst_70 {dimension_numbers = #tpu.dot_dimension_numbers<[1], [0], [0], [1], [0, 0, 1, 1], [], []>} : vector<8x128xf32>, vector<128x128xf32>, vector<8x128xf32> -> vector<8x128xf32>
    %c13 = arith.constant 13 : index
    %c0_71 = arith.constant 0 : index
    %177 = vector.load %arg8[%c13, %c0_71] : memref<16x256xf32, #tpu.memory_space<vmem>>, vector<1x128xf32>
    %178 = vector.broadcast %177 : vector<1x128xf32> to vector<8x128xf32>
    %179 = arith.addf %176, %178 : vector<8x128xf32>
    %c0_72 = arith.constant 0 : index
    %c0_73 = arith.constant 0 : index
    %180 = vector.load %arg9[%c0_72, %c0_73] : memref<8x128xf32, #tpu.memory_space<vmem>>, vector<8x128xf32>
    tpu.vector_store %arg9[%c0_72, %c0_73], %179 {strides = array<i32>} : memref<8x128xf32, #tpu.memory_space<vmem>>, vector<8x128xf32>,
    %c0_74 = arith.constant 0 : index
    %c0_75 = arith.constant 0 : index
    %181 = vector.load %arg10[%c0_74, %c0_75] : memref<8x128xf32, #tpu.memory_space<vmem>>, vector<8x128xf32>
    tpu.vector_store %arg10[%c0_74, %c0_75], %87 {strides = array<i32>} : memref<8x128xf32, #tpu.memory_space<vmem>>, vector<8x128xf32>,
    %c0_76 = arith.constant 0 : index
    %c0_77 = arith.constant 0 : index
    %182 = vector.load %arg11[%c0_76, %c0_77] : memref<8x128xf32, #tpu.memory_space<vmem>>, vector<8x128xf32>
    tpu.vector_store %arg11[%c0_76, %c0_77], %88 {strides = array<i32>} : memref<8x128xf32, #tpu.memory_space<vmem>>, vector<8x128xf32>,
    return
  }
  func.func @transform_0(%arg0: i32) -> (i32, i32) {
    %c0_i32 = arith.constant 0 : i32
    %c0_i32_0 = arith.constant 0 : i32
    return %arg0, %c0_i32 : i32, i32
  }
  func.func @transform_1(%arg0: i32) -> (i32, i32) {
    %c0_i32 = arith.constant 0 : i32
    %c0_i32_0 = arith.constant 0 : i32
    %c0_i32_1 = arith.constant 0 : i32
    return %c0_i32, %c0_i32_0 : i32, i32
  }
  func.func @transform_2(%arg0: i32) -> (i32, i32) {
    %c0_i32 = arith.constant 0 : i32
    %c0_i32_0 = arith.constant 0 : i32
    %c0_i32_1 = arith.constant 0 : i32
    return %c0_i32, %c0_i32_0 : i32, i32
  }
  func.func @transform_3(%arg0: i32) -> (i32, i32) {
    %c0_i32 = arith.constant 0 : i32
    %c0_i32_0 = arith.constant 0 : i32
    %c0_i32_1 = arith.constant 0 : i32
    return %c0_i32, %c0_i32_0 : i32, i32
  }
  func.func @transform_4(%arg0: i32) -> (i32, i32) {
    %c0_i32 = arith.constant 0 : i32
    %c0_i32_0 = arith.constant 0 : i32
    %c0_i32_1 = arith.constant 0 : i32
    return %c0_i32, %c0_i32_0 : i32, i32
  }
  func.func @transform_5(%arg0: i32) -> (i32, i32) {
    %c0_i32 = arith.constant 0 : i32
    %c0_i32_0 = arith.constant 0 : i32
    %c0_i32_1 = arith.constant 0 : i32
    return %c0_i32, %c0_i32_0 : i32, i32
  }
  func.func @transform_6(%arg0: i32) -> (i32, i32) {
    %c0_i32 = arith.constant 0 : i32
    %c0_i32_0 = arith.constant 0 : i32
    %c0_i32_1 = arith.constant 0 : i32
    return %c0_i32, %c0_i32_0 : i32, i32
  }
  func.func @transform_7(%arg0: i32) -> (i32, i32) {
    %c0_i32 = arith.constant 0 : i32
    %c0_i32_0 = arith.constant 0 : i32
    %c0_i32_1 = arith.constant 0 : i32
    return %c0_i32, %c0_i32_0 : i32, i32
  }
  func.func @transform_8(%arg0: i32) -> (i32, i32) {
    %c0_i32 = arith.constant 0 : i32
    %c0_i32_0 = arith.constant 0 : i32
    return %arg0, %c0_i32 : i32, i32
  }
  func.func @transform_9(%arg0: i32) -> (i32, i32) {
    %c0_i32 = arith.constant 0 : i32
    %c0_i32_0 = arith.constant 0 : i32
    return %arg0, %c0_i32 : i32, i32
  }
  func.func @transform_10(%arg0: i32) -> (i32, i32) {
    %c0_i32 = arith.constant 0 : i32
    %c0_i32_0 = arith.constant 0 : i32
    return %arg0, %c0_i32 : i32, i32
  }
}

module attributes {stable_mosaic.version = 11 : i64} {
  func.func @kernel(%arg0: i32, %arg1: memref<8x384xf32, #tpu.memory_space<vmem>>, %arg2: memref<256x128xf32, #tpu.memory_space<vmem>>, %arg3: memref<128x128xf32, #tpu.memory_space<vmem>>, %arg4: memref<128x256xf32, #tpu.memory_space<vmem>>, %arg5: memref<256x128xf32, #tpu.memory_space<vmem>>, %arg6: memref<128x128xf32, #tpu.memory_space<vmem>>, %arg7: memref<128x128xf32, #tpu.memory_space<vmem>>, %arg8: memref<16x256xf32, #tpu.memory_space<vmem>>, %arg9: memref<8x128xf32, #tpu.memory_space<vmem>>, %arg10: memref<8x128xf32, #tpu.memory_space<vmem>>, %arg11: memref<8x128xf32, #tpu.memory_space<vmem>>) attributes {dimension_semantics = [#tpu.dimension_semantics<parallel>], iteration_bounds = array<i64: 1>, scalar_prefetch = 0 : i64, scratch_operands = 0 : i64, tpu.core_type = #tpu.core_type<tc>, window_params = [{transform_indices = @transform_0, window_bounds = array<i64: 8, 384>}, {pipeline_mode = #tpu.pipeline_mode<synchronous>, transform_indices = @transform_1, window_bounds = array<i64: 256, 128>}, {pipeline_mode = #tpu.pipeline_mode<synchronous>, transform_indices = @transform_2, window_bounds = array<i64: 128, 128>}, {pipeline_mode = #tpu.pipeline_mode<synchronous>, transform_indices = @transform_3, window_bounds = array<i64: 128, 256>}, {pipeline_mode = #tpu.pipeline_mode<synchronous>, transform_indices = @transform_4, window_bounds = array<i64: 256, 128>}, {pipeline_mode = #tpu.pipeline_mode<synchronous>, transform_indices = @transform_5, window_bounds = array<i64: 128, 128>}, {pipeline_mode = #tpu.pipeline_mode<synchronous>, transform_indices = @transform_6, window_bounds = array<i64: 128, 128>}, {pipeline_mode = #tpu.pipeline_mode<synchronous>, transform_indices = @transform_7, window_bounds = array<i64: 16, 256>}, {transform_indices = @transform_8, window_bounds = array<i64: 8, 128>}, {transform_indices = @transform_9, window_bounds = array<i64: 8, 128>}, {transform_indices = @transform_10, window_bounds = array<i64: 8, 128>}]} {
    %c0 = arith.constant 0 : index
    %c0_0 = arith.constant 0 : index
    %0 = vector.load %arg1[%c0, %c0_0] : memref<8x384xf32, #tpu.memory_space<vmem>>, vector<8x384xf32>
    %1 = vector.extract_strided_slice %0 {offsets = [0, 0], sizes = [8, 256], strides = [1, 1]} : vector<8x384xf32> to vector<8x256xf32>
    %2 = vector.extract_strided_slice %0 {offsets = [0, 128], sizes = [8, 128], strides = [1, 1]} : vector<8x384xf32> to vector<8x128xf32>
    %3 = vector.extract_strided_slice %0 {offsets = [0, 256], sizes = [8, 128], strides = [1, 1]} : vector<8x384xf32> to vector<8x128xf32>
    %c0_1 = arith.constant 0 : index
    %c0_2 = arith.constant 0 : index
    %4 = vector.load %arg2[%c0_1, %c0_2] : memref<256x128xf32, #tpu.memory_space<vmem>>, vector<256x128xf32>
    %cst = arith.constant dense<0.000000e+00> : vector<8x128xf32>
    %5 = tpu.matmul %1, %4, %cst {dimension_numbers = #tpu.dot_dimension_numbers<[1], [0], [0], [1], [0, 0, 1, 1], [], []>} : vector<8x256xf32>, vector<256x128xf32>, vector<8x128xf32> -> vector<8x128xf32>
    %c0_3 = arith.constant 0 : index
    %c0_4 = arith.constant 0 : index
    %6 = vector.load %arg8[%c0_3, %c0_4] : memref<16x256xf32, #tpu.memory_space<vmem>>, vector<1x128xf32>
    %7 = vector.broadcast %6 : vector<1x128xf32> to vector<8x128xf32>
    %8 = arith.addf %5, %7 : vector<8x128xf32>
    %c1 = arith.constant 1 : index
    %c0_5 = arith.constant 0 : index
    %9 = vector.load %arg8[%c1, %c0_5] : memref<16x256xf32, #tpu.memory_space<vmem>>, vector<1x128xf32>
    %c2 = arith.constant 2 : index
    %c0_6 = arith.constant 0 : index
    %10 = vector.load %arg8[%c2, %c0_6] : memref<16x256xf32, #tpu.memory_space<vmem>>, vector<1x128xf32>
    %cst_7 = arith.constant dense<0.000000e+00> : vector<8xf32>
    %11 = vector.multi_reduction <add>, %8, %cst_7 [1] : vector<8x128xf32> to vector<8xf32>
    %12 = vector.shape_cast %11 : vector<8xf32> to vector<8x1xf32>
    %cst_8 = arith.constant 3.125000e-02 : f32
    %13 = vector.broadcast %cst_8 : f32 to vector<8x1xf32>
    %14 = arith.mulf %12, %13 : vector<8x1xf32>
    %15 = vector.broadcast %14 : vector<8x1xf32> to vector<8x128xf32>
    %16 = arith.subf %8, %15 : vector<8x128xf32>
    %17 = arith.mulf %16, %16 : vector<8x128xf32>
    %cst_9 = arith.constant dense<0.000000e+00> : vector<8xf32>
    %18 = vector.multi_reduction <add>, %17, %cst_9 [1] : vector<8x128xf32> to vector<8xf32>
    %19 = vector.shape_cast %18 : vector<8xf32> to vector<8x1xf32>
    %20 = arith.mulf %14, %14 : vector<8x1xf32>
    %cst_10 = arith.constant 9.600000e+01 : f32
    %21 = vector.broadcast %cst_10 : f32 to vector<8x1xf32>
    %22 = arith.mulf %21, %20 : vector<8x1xf32>
    %23 = arith.subf %19, %22 : vector<8x1xf32>
    %cst_11 = arith.constant 3.125000e-02 : f32
    %24 = vector.broadcast %cst_11 : f32 to vector<8x1xf32>
    %25 = arith.mulf %23, %24 : vector<8x1xf32>
    %cst_12 = arith.constant 9.99999974E-6 : f32
    %26 = vector.broadcast %cst_12 : f32 to vector<8x1xf32>
    %27 = arith.addf %25, %26 : vector<8x1xf32>
    %28 = math.rsqrt %27 : vector<8x1xf32>
    %29 = vector.broadcast %28 : vector<8x1xf32> to vector<8x128xf32>
    %30 = arith.mulf %16, %29 : vector<8x128xf32>
    %31 = vector.broadcast %9 : vector<1x128xf32> to vector<8x128xf32>
    %32 = arith.mulf %30, %31 : vector<8x128xf32>
    %33 = vector.broadcast %10 : vector<1x128xf32> to vector<8x128xf32>
    %34 = arith.addf %32, %33 : vector<8x128xf32>
    %cst_13 = arith.constant 0.000000e+00 : f32
    %35 = vector.broadcast %cst_13 : f32 to vector<8x128xf32>
    %36 = arith.cmpf ogt, %34, %35 : vector<8x128xf32>
    %cst_14 = arith.constant 0.000000e+00 : f32
    %37 = vector.broadcast %cst_14 : f32 to vector<8x128xf32>
    %38 = arith.minimumf %34, %37 : vector<8x128xf32>
    %39 = math.exp %38 : vector<8x128xf32>
    %cst_15 = arith.constant 1.000000e+00 : f32
    %40 = vector.broadcast %cst_15 : f32 to vector<8x128xf32>
    %41 = arith.subf %39, %40 : vector<8x128xf32>
    %42 = arith.select %36, %34, %41 : vector<8x128xi1>, vector<8x128xf32>
    %c0_16 = arith.constant 0 : index
    %c0_17 = arith.constant 0 : index
    %43 = vector.load %arg3[%c0_16, %c0_17] : memref<128x128xf32, #tpu.memory_space<vmem>>, vector<128x128xf32>
    %cst_18 = arith.constant dense<0.000000e+00> : vector<8x128xf32>
    %44 = tpu.matmul %42, %43, %cst_18 {dimension_numbers = #tpu.dot_dimension_numbers<[1], [0], [0], [1], [0, 0, 1, 1], [], []>} : vector<8x128xf32>, vector<128x128xf32>, vector<8x128xf32> -> vector<8x128xf32>
    %c3 = arith.constant 3 : index
    %c0_19 = arith.constant 0 : index
    %45 = vector.load %arg8[%c3, %c0_19] : memref<16x256xf32, #tpu.memory_space<vmem>>, vector<1x128xf32>
    %46 = vector.broadcast %45 : vector<1x128xf32> to vector<8x128xf32>
    %47 = arith.addf %44, %46 : vector<8x128xf32>
    %c4 = arith.constant 4 : index
    %c0_20 = arith.constant 0 : index
    %48 = vector.load %arg8[%c4, %c0_20] : memref<16x256xf32, #tpu.memory_space<vmem>>, vector<1x128xf32>
    %c5 = arith.constant 5 : index
    %c0_21 = arith.constant 0 : index
    %49 = vector.load %arg8[%c5, %c0_21] : memref<16x256xf32, #tpu.memory_space<vmem>>, vector<1x128xf32>
    %cst_22 = arith.constant dense<0.000000e+00> : vector<8xf32>
    %50 = vector.multi_reduction <add>, %47, %cst_22 [1] : vector<8x128xf32> to vector<8xf32>
    %51 = vector.shape_cast %50 : vector<8xf32> to vector<8x1xf32>
    %cst_23 = arith.constant 6.250000e-02 : f32
    %52 = vector.broadcast %cst_23 : f32 to vector<8x1xf32>
    %53 = arith.mulf %51, %52 : vector<8x1xf32>
    %54 = vector.broadcast %53 : vector<8x1xf32> to vector<8x128xf32>
    %55 = arith.subf %47, %54 : vector<8x128xf32>
    %56 = arith.mulf %55, %55 : vector<8x128xf32>
    %cst_24 = arith.constant dense<0.000000e+00> : vector<8xf32>
    %57 = vector.multi_reduction <add>, %56, %cst_24 [1] : vector<8x128xf32> to vector<8xf32>
    %58 = vector.shape_cast %57 : vector<8xf32> to vector<8x1xf32>
    %59 = arith.mulf %53, %53 : vector<8x1xf32>
    %cst_25 = arith.constant 1.120000e+02 : f32
    %60 = vector.broadcast %cst_25 : f32 to vector<8x1xf32>
    %61 = arith.mulf %60, %59 : vector<8x1xf32>
    %62 = arith.subf %58, %61 : vector<8x1xf32>
    %cst_26 = arith.constant 6.250000e-02 : f32
    %63 = vector.broadcast %cst_26 : f32 to vector<8x1xf32>
    %64 = arith.mulf %62, %63 : vector<8x1xf32>
    %cst_27 = arith.constant 9.99999974E-6 : f32
    %65 = vector.broadcast %cst_27 : f32 to vector<8x1xf32>
    %66 = arith.addf %64, %65 : vector<8x1xf32>
    %67 = math.rsqrt %66 : vector<8x1xf32>
    %68 = vector.broadcast %67 : vector<8x1xf32> to vector<8x128xf32>
    %69 = arith.mulf %55, %68 : vector<8x128xf32>
    %70 = vector.broadcast %48 : vector<1x128xf32> to vector<8x128xf32>
    %71 = arith.mulf %69, %70 : vector<8x128xf32>
    %72 = vector.broadcast %49 : vector<1x128xf32> to vector<8x128xf32>
    %73 = arith.addf %71, %72 : vector<8x128xf32>
    %cst_28 = arith.constant 0.000000e+00 : f32
    %74 = vector.broadcast %cst_28 : f32 to vector<8x128xf32>
    %75 = arith.cmpf ogt, %73, %74 : vector<8x128xf32>
    %cst_29 = arith.constant 0.000000e+00 : f32
    %76 = vector.broadcast %cst_29 : f32 to vector<8x128xf32>
    %77 = arith.minimumf %73, %76 : vector<8x128xf32>
    %78 = math.exp %77 : vector<8x128xf32>
    %cst_30 = arith.constant 1.000000e+00 : f32
    %79 = vector.broadcast %cst_30 : f32 to vector<8x128xf32>
    %80 = arith.subf %78, %79 : vector<8x128xf32>
    %81 = arith.select %75, %73, %80 : vector<8x128xi1>, vector<8x128xf32>
    %c0_31 = arith.constant 0 : index
    %c0_32 = arith.constant 0 : index
    %82 = vector.load %arg4[%c0_31, %c0_32] : memref<128x256xf32, #tpu.memory_space<vmem>>, vector<128x256xf32>
    %cst_33 = arith.constant dense<0.000000e+00> : vector<8x256xf32>
    %83 = tpu.matmul %81, %82, %cst_33 {dimension_numbers = #tpu.dot_dimension_numbers<[1], [0], [0], [1], [0, 0, 1, 1], [], []>} : vector<8x128xf32>, vector<128x256xf32>, vector<8x256xf32> -> vector<8x256xf32>
    %c6 = arith.constant 6 : index
    %c0_34 = arith.constant 0 : index
    %84 = vector.load %arg8[%c6, %c0_34] : memref<16x256xf32, #tpu.memory_space<vmem>>, vector<1x256xf32>
    %85 = vector.broadcast %84 : vector<1x256xf32> to vector<8x256xf32>
    %86 = arith.addf %83, %85 : vector<8x256xf32>
    %87 = vector.extract_strided_slice %86 {offsets = [0, 0], sizes = [8, 128], strides = [1, 1]} : vector<8x256xf32> to vector<8x128xf32>
    %88 = vector.extract_strided_slice %86 {offsets = [0, 128], sizes = [8, 128], strides = [1, 1]} : vector<8x256xf32> to vector<8x128xf32>
    %cst_35 = arith.constant 5.000000e-01 : f32
    %89 = vector.broadcast %cst_35 : f32 to vector<8x128xf32>
    %90 = arith.mulf %89, %88 : vector<8x128xf32>
    %91 = math.exp %90 : vector<8x128xf32>
    %92 = arith.mulf %3, %91 : vector<8x128xf32>
    %93 = arith.addf %87, %92 : vector<8x128xf32>
    %c0_36 = arith.constant 0 : index
    %c0_37 = arith.constant 0 : index
    %94 = vector.load %arg5[%c0_36, %c0_37] : memref<256x128xf32, #tpu.memory_space<vmem>>, vector<128x128xf32>
    %cst_38 = arith.constant dense<0.000000e+00> : vector<8x128xf32>
    %95 = tpu.matmul %93, %94, %cst_38 {dimension_numbers = #tpu.dot_dimension_numbers<[1], [0], [0], [1], [0, 0, 1, 1], [], []>} : vector<8x128xf32>, vector<128x128xf32>, vector<8x128xf32> -> vector<8x128xf32>
    %c128 = arith.constant 128 : index
    %c0_39 = arith.constant 0 : index
    %96 = vector.load %arg5[%c128, %c0_39] : memref<256x128xf32, #tpu.memory_space<vmem>>, vector<128x128xf32>
    %cst_40 = arith.constant dense<0.000000e+00> : vector<8x128xf32>
    %97 = tpu.matmul %2, %96, %cst_40 {dimension_numbers = #tpu.dot_dimension_numbers<[1], [0], [0], [1], [0, 0, 1, 1], [], []>} : vector<8x128xf32>, vector<128x128xf32>, vector<8x128xf32> -> vector<8x128xf32>
    %98 = arith.addf %95, %97 : vector<8x128xf32>
    %c7 = arith.constant 7 : index
    %c0_41 = arith.constant 0 : index
    %99 = vector.load %arg8[%c7, %c0_41] : memref<16x256xf32, #tpu.memory_space<vmem>>, vector<1x128xf32>
    %100 = vector.broadcast %99 : vector<1x128xf32> to vector<8x128xf32>
    %101 = arith.addf %98, %100 : vector<8x128xf32>
    %c8 = arith.constant 8 : index
    %c0_42 = arith.constant 0 : index
    %102 = vector.load %arg8[%c8, %c0_42] : memref<16x256xf32, #tpu.memory_space<vmem>>, vector<1x128xf32>
    %c9 = arith.constant 9 : index
    %c0_43 = arith.constant 0 : index
    %103 = vector.load %arg8[%c9, %c0_43] : memref<16x256xf32, #tpu.memory_space<vmem>>, vector<1x128xf32>
    %cst_44 = arith.constant dense<0.000000e+00> : vector<8xf32>
    %104 = vector.multi_reduction <add>, %101, %cst_44 [1] : vector<8x128xf32> to vector<8xf32>
    %105 = vector.shape_cast %104 : vector<8xf32> to vector<8x1xf32>
    %cst_45 = arith.constant 6.250000e-02 : f32
    %106 = vector.broadcast %cst_45 : f32 to vector<8x1xf32>
    %107 = arith.mulf %105, %106 : vector<8x1xf32>
    %108 = vector.broadcast %107 : vector<8x1xf32> to vector<8x128xf32>
    %109 = arith.subf %101, %108 : vector<8x128xf32>
    %110 = arith.mulf %109, %109 : vector<8x128xf32>
    %cst_46 = arith.constant dense<0.000000e+00> : vector<8xf32>
    %111 = vector.multi_reduction <add>, %110, %cst_46 [1] : vector<8x128xf32> to vector<8xf32>
    %112 = vector.shape_cast %111 : vector<8xf32> to vector<8x1xf32>
    %113 = arith.mulf %107, %107 : vector<8x1xf32>
    %cst_47 = arith.constant 1.120000e+02 : f32
    %114 = vector.broadcast %cst_47 : f32 to vector<8x1xf32>
    %115 = arith.mulf %114, %113 : vector<8x1xf32>
    %116 = arith.subf %112, %115 : vector<8x1xf32>
    %cst_48 = arith.constant 6.250000e-02 : f32
    %117 = vector.broadcast %cst_48 : f32 to vector<8x1xf32>
    %118 = arith.mulf %116, %117 : vector<8x1xf32>
    %cst_49 = arith.constant 9.99999974E-6 : f32
    %119 = vector.broadcast %cst_49 : f32 to vector<8x1xf32>
    %120 = arith.addf %118, %119 : vector<8x1xf32>
    %121 = math.rsqrt %120 : vector<8x1xf32>
    %122 = vector.broadcast %121 : vector<8x1xf32> to vector<8x128xf32>
    %123 = arith.mulf %109, %122 : vector<8x128xf32>
    %124 = vector.broadcast %102 : vector<1x128xf32> to vector<8x128xf32>
    %125 = arith.mulf %123, %124 : vector<8x128xf32>
    %126 = vector.broadcast %103 : vector<1x128xf32> to vector<8x128xf32>
    %127 = arith.addf %125, %126 : vector<8x128xf32>
    %cst_50 = arith.constant 0.000000e+00 : f32
    %128 = vector.broadcast %cst_50 : f32 to vector<8x128xf32>
    %129 = arith.cmpf ogt, %127, %128 : vector<8x128xf32>
    %cst_51 = arith.constant 0.000000e+00 : f32
    %130 = vector.broadcast %cst_51 : f32 to vector<8x128xf32>
    %131 = arith.minimumf %127, %130 : vector<8x128xf32>
    %132 = math.exp %131 : vector<8x128xf32>
    %cst_52 = arith.constant 1.000000e+00 : f32
    %133 = vector.broadcast %cst_52 : f32 to vector<8x128xf32>
    %134 = arith.subf %132, %133 : vector<8x128xf32>
    %135 = arith.select %129, %127, %134 : vector<8x128xi1>, vector<8x128xf32>
    %c0_53 = arith.constant 0 : index
    %c0_54 = arith.constant 0 : index
    %136 = vector.load %arg6[%c0_53, %c0_54] : memref<128x128xf32, #tpu.memory_space<vmem>>, vector<128x128xf32>
    %cst_55 = arith.constant dense<0.000000e+00> : vector<8x128xf32>
    %137 = tpu.matmul %135, %136, %cst_55 {dimension_numbers = #tpu.dot_dimension_numbers<[1], [0], [0], [1], [0, 0, 1, 1], [], []>} : vector<8x128xf32>, vector<128x128xf32>, vector<8x128xf32> -> vector<8x128xf32>
    %c10 = arith.constant 10 : index
    %c0_56 = arith.constant 0 : index
    %138 = vector.load %arg8[%c10, %c0_56] : memref<16x256xf32, #tpu.memory_space<vmem>>, vector<1x128xf32>
    %139 = vector.broadcast %138 : vector<1x128xf32> to vector<8x128xf32>
    %140 = arith.addf %137, %139 : vector<8x128xf32>
    %c11 = arith.constant 11 : index
    %c0_57 = arith.constant 0 : index
    %141 = vector.load %arg8[%c11, %c0_57] : memref<16x256xf32, #tpu.memory_space<vmem>>, vector<1x128xf32>
    %c12 = arith.constant 12 : index
    %c0_58 = arith.constant 0 : index
    %142 = vector.load %arg8[%c12, %c0_58] : memref<16x256xf32, #tpu.memory_space<vmem>>, vector<1x128xf32>
    %cst_59 = arith.constant dense<0.000000e+00> : vector<8xf32>
    %143 = vector.multi_reduction <add>, %140, %cst_59 [1] : vector<8x128xf32> to vector<8xf32>
    %144 = vector.shape_cast %143 : vector<8xf32> to vector<8x1xf32>
    %cst_60 = arith.constant 3.125000e-02 : f32
    %145 = vector.broadcast %cst_60 : f32 to vector<8x1xf32>
    %146 = arith.mulf %144, %145 : vector<8x1xf32>
    %147 = vector.broadcast %146 : vector<8x1xf32> to vector<8x128xf32>
    %148 = arith.subf %140, %147 : vector<8x128xf32>
    %149 = arith.mulf %148, %148 : vector<8x128xf32>
    %cst_61 = arith.constant dense<0.000000e+00> : vector<8xf32>
    %150 = vector.multi_reduction <add>, %149, %cst_61 [1] : vector<8x128xf32> to vector<8xf32>
    %151 = vector.shape_cast %150 : vector<8xf32> to vector<8x1xf32>
    %152 = arith.mulf %146, %146 : vector<8x1xf32>
    %cst_62 = arith.constant 9.600000e+01 : f32
    %153 = vector.broadcast %cst_62 : f32 to vector<8x1xf32>
    %154 = arith.mulf %153, %152 : vector<8x1xf32>
    %155 = arith.subf %151, %154 : vector<8x1xf32>
    %cst_63 = arith.constant 3.125000e-02 : f32
    %156 = vector.broadcast %cst_63 : f32 to vector<8x1xf32>
    %157 = arith.mulf %155, %156 : vector<8x1xf32>
    %cst_64 = arith.constant 9.99999974E-6 : f32
    %158 = vector.broadcast %cst_64 : f32 to vector<8x1xf32>
    %159 = arith.addf %157, %158 : vector<8x1xf32>
    %160 = math.rsqrt %159 : vector<8x1xf32>
    %161 = vector.broadcast %160 : vector<8x1xf32> to vector<8x128xf32>
    %162 = arith.mulf %148, %161 : vector<8x128xf32>
    %163 = vector.broadcast %141 : vector<1x128xf32> to vector<8x128xf32>
    %164 = arith.mulf %162, %163 : vector<8x128xf32>
    %165 = vector.broadcast %142 : vector<1x128xf32> to vector<8x128xf32>
    %166 = arith.addf %164, %165 : vector<8x128xf32>
    %cst_65 = arith.constant 0.000000e+00 : f32
    %167 = vector.broadcast %cst_65 : f32 to vector<8x128xf32>
    %168 = arith.cmpf ogt, %166, %167 : vector<8x128xf32>
    %cst_66 = arith.constant 0.000000e+00 : f32
    %169 = vector.broadcast %cst_66 : f32 to vector<8x128xf32>
    %170 = arith.minimumf %166, %169 : vector<8x128xf32>
    %171 = math.exp %170 : vector<8x128xf32>
    %cst_67 = arith.constant 1.000000e+00 : f32
    %172 = vector.broadcast %cst_67 : f32 to vector<8x128xf32>
    %173 = arith.subf %171, %172 : vector<8x128xf32>
    %174 = arith.select %168, %166, %173 : vector<8x128xi1>, vector<8x128xf32>
    %c0_68 = arith.constant 0 : index
    %c0_69 = arith.constant 0 : index
    %175 = vector.load %arg7[%c0_68, %c0_69] : memref<128x128xf32, #tpu.memory_space<vmem>>, vector<128x128xf32>
    %cst_70 = arith.constant dense<0.000000e+00> : vector<8x128xf32>
    %176 = tpu.matmul %174, %175, %cst_70 {dimension_numbers = #tpu.dot_dimension_numbers<[1], [0], [0], [1], [0, 0, 1, 1], [], []>} : vector<8x128xf32>, vector<128x128xf32>, vector<8x128xf32> -> vector<8x128xf32>
    %c13 = arith.constant 13 : index
    %c0_71 = arith.constant 0 : index
    %177 = vector.load %arg8[%c13, %c0_71] : memref<16x256xf32, #tpu.memory_space<vmem>>, vector<1x128xf32>
    %178 = vector.broadcast %177 : vector<1x128xf32> to vector<8x128xf32>
    %179 = arith.addf %176, %178 : vector<8x128xf32>
    %c0_72 = arith.constant 0 : index
    %c0_73 = arith.constant 0 : index
    %180 = vector.load %arg9[%c0_72, %c0_73] : memref<8x128xf32, #tpu.memory_space<vmem>>, vector<8x128xf32>
    tpu.vector_store %arg9[%c0_72, %c0_73], %179 {strides = array<i32>} : memref<8x128xf32, #tpu.memory_space<vmem>>, vector<8x128xf32>,
    %c0_74 = arith.constant 0 : index
    %c0_75 = arith.constant 0 : index
    %181 = vector.load %arg10[%c0_74, %c0_75] : memref<8x128xf32, #tpu.memory_space<vmem>>, vector<8x128xf32>
    tpu.vector_store %arg10[%c0_74, %c0_75], %87 {strides = array<i32>} : memref<8x128xf32, #tpu.memory_space<vmem>>, vector<8x128xf32>,
    %c0_76 = arith.constant 0 : index
    %c0_77 = arith.constant 0 : index
    %182 = vector.load %arg11[%c0_76, %c0_77] : memref<8x128xf32, #tpu.memory_space<vmem>>, vector<8x128xf32>
    tpu.vector_store %arg11[%c0_76, %c0_77], %88 {strides = array<i32>} : memref<8x128xf32, #tpu.memory_space<vmem>>, vector<8x128xf32>,
    return
  }
  func.func @transform_0(%arg0: i32) -> (i32, i32) {
    %c0_i32 = arith.constant 0 : i32
    %c0_i32_0 = arith.constant 0 : i32
    return %arg0, %c0_i32 : i32, i32
  }
  func.func @transform_1(%arg0: i32) -> (i32, i32) {
    %c0_i32 = arith.constant 0 : i32
    %c0_i32_0 = arith.constant 0 : i32
    %c0_i32_1 = arith.constant 0 : i32
    return %c0_i32, %c0_i32_0 : i32, i32
  }
  func.func @transform_2(%arg0: i32) -> (i32, i32) {
    %c0_i32 = arith.constant 0 : i32
    %c0_i32_0 = arith.constant 0 : i32
    %c0_i32_1 = arith.constant 0 : i32
    return %c0_i32, %c0_i32_0 : i32, i32
  }
  func.func @transform_3(%arg0: i32) -> (i32, i32) {
    %c0_i32 = arith.constant 0 : i32
    %c0_i32_0 = arith.constant 0 : i32
    %c0_i32_1 = arith.constant 0 : i32
    return %c0_i32, %c0_i32_0 : i32, i32
  }
  func.func @transform_4(%arg0: i32) -> (i32, i32) {
    %c0_i32 = arith.constant 0 : i32
    %c0_i32_0 = arith.constant 0 : i32
    %c0_i32_1 = arith.constant 0 : i32
    return %c0_i32, %c0_i32_0 : i32, i32
  }
  func.func @transform_5(%arg0: i32) -> (i32, i32) {
    %c0_i32 = arith.constant 0 : i32
    %c0_i32_0 = arith.constant 0 : i32
    %c0_i32_1 = arith.constant 0 : i32
    return %c0_i32, %c0_i32_0 : i32, i32
  }
  func.func @transform_6(%arg0: i32) -> (i32, i32) {
    %c0_i32 = arith.constant 0 : i32
    %c0_i32_0 = arith.constant 0 : i32
    %c0_i32_1 = arith.constant 0 : i32
    return %c0_i32, %c0_i32_0 : i32, i32
  }
  func.func @transform_7(%arg0: i32) -> (i32, i32) {
    %c0_i32 = arith.constant 0 : i32
    %c0_i32_0 = arith.constant 0 : i32
    %c0_i32_1 = arith.constant 0 : i32
    return %c0_i32, %c0_i32_0 : i32, i32
  }
  func.func @transform_8(%arg0: i32) -> (i32, i32) {
    %c0_i32 = arith.constant 0 : i32
    %c0_i32_0 = arith.constant 0 : i32
    return %arg0, %c0_i32 : i32, i32
  }
  func.func @transform_9(%arg0: i32) -> (i32, i32) {
    %c0_i32 = arith.constant 0 : i32
    %c0_i32_0 = arith.constant 0 : i32
    return %arg0, %c0_i32 : i32, i32
  }
  func.func @transform_10(%arg0: i32) -> (i32, i32) {
    %c0_i32 = arith.constant 0 : i32
    %c0_i32_0 = arith.constant 0 : i32
    return %arg0, %c0_i32 : i32, i32
  }
}

</mosaic_0001>

<llo_original>
// kernel: _fwd.1
$region0: #{_fwd.1}
  #allocation0 [shape = 'u32[]', space=smem, size = 0x4, offset = 0x4, fixed_abs, tag = 'smem constant byte address 0x4 - core index']
  #allocation1 [shape = 'u32[144,128]{1,0:T(1,128)}', space=vmem, size = 0x12000, scoped, tag = 'internal scratch']
  %s0 = inlined_call_operand.vmem [shape: f32[8,384], index: 0, kind: input, shape index: {}]
  %s1 = inlined_call_operand.hbm [shape: f32[256,128], index: 1, kind: input, shape index: {}]
  %s2 = inlined_call_operand.hbm [shape: f32[128,128], index: 2, kind: input, shape index: {}]
  %s3 = inlined_call_operand.hbm [shape: f32[128,256], index: 3, kind: input, shape index: {}]
  %s4 = inlined_call_operand.hbm [shape: f32[256,128], index: 4, kind: input, shape index: {}]
  %s5 = inlined_call_operand.hbm [shape: f32[128,128], index: 5, kind: input, shape index: {}]
  %s6 = inlined_call_operand.hbm [shape: f32[128,128], index: 6, kind: input, shape index: {}]
  %s7 = inlined_call_operand.vmem [shape: f32[16,256], index: 7, kind: input, shape index: {}]
  %s8 = inlined_call_operand.hbm [shape: f32[8,128], index: 8, kind: output, shape index: {0}]
  %s9 = inlined_call_operand.hbm [shape: f32[8,128], index: 9, kind: output, shape index: {1}]
  %s10 = inlined_call_operand.hbm [shape: f32[8,128], index: 10, kind: output, shape index: {2}]
  %11 = xla_tuple %s8, %s9, %s10
  %s12 = sld [smem:[#allocation0]]
  $region82: #{_fwd.1} parent=0
    _
  %s14 = ssub.s32 1, %s12
  %s15 = scalar_select 0, %s14, %s12
  $region1: #{_fwd.1} parent=0
    #allocation2 [shape = 'u8[131072]{0}', space=vmem, size = 0x20000, scoped, tag = 'input window, operand 1, single buffered']
    #allocation3 [shape = 's32[1]{0}', space=sflag, size = 0x4, scoped, tag = 'scoped memory for _fwd.1']
    #allocation4 [shape = 's32[1]{0}', space=sflag, size = 0x4, scoped, tag = 'scoped memory for _fwd.1']
    #allocation5 [shape = 'u8[65536]{0}', space=vmem, size = 0x10000, scoped, tag = 'input window, operand 2, single buffered']
    #allocation6 [shape = 's32[1]{0}', space=sflag, size = 0x4, scoped, tag = 'scoped memory for _fwd.1']
    #allocation7 [shape = 'u8[131072]{0}', space=vmem, size = 0x20000, scoped, tag = 'input window, operand 3, single buffered']
    #allocation8 [shape = 'u8[131072]{0}', space=vmem, size = 0x20000, scoped, tag = 'input window, operand 4, single buffered']
    #allocation9 [shape = 's32[1]{0}', space=sflag, size = 0x4, scoped, tag = 'scoped memory for _fwd.1']
    #allocation10 [shape = 'u8[65536]{0}', space=vmem, size = 0x10000, scoped, tag = 'input window, operand 5, single buffered']
    #allocation11 [shape = 'u8[65536]{0}', space=vmem, size = 0x10000, scoped, tag = 'input window, operand 6, single buffered']
    #allocation12 [shape = 's32[1]{0}', space=sflag, size = 0x4, scoped, tag = 'scoped memory for _fwd.1']
    #allocation13 [shape = 'u8[4096]{0}', space=vmem, size = 0x1000, scoped, tag = 'output window, operand 0, single buffered']
    #allocation14 [shape = 'u8[4096]{0}', space=vmem, size = 0x1000, scoped, tag = 'output window, operand 1, single buffered']
    #allocation15 [shape = 's32[1]{0}', space=sflag, size = 0x4, scoped, tag = 'scoped memory for _fwd.1']
    #allocation16 [shape = 'u8[4096]{0}', space=vmem, size = 0x1000, scoped, tag = 'output window, operand 2, single buffered']
    %16 = vsyncpa [#allocation3], 0
    %17 = vsyncpa [#allocation6], 0
    %18 = vsyncpa [#allocation9], 0
    %19 = vsyncpa [#allocation12], 0
    %20 = vsyncpa [#allocation4], 0
    %21 = vsyncpa [#allocation15], 0
    // Predicated region
    $region2: #{_fwd.1} parent=1 // pred_check
      _
    $region3: #{_fwd.1} parent=1 // pred_check_branch
      %23 = sbr.rel (0) target = $region5
    $region4: #{_fwd.1} parent=1 // pred_region
      _
    $region5: #{_fwd.1} parent=1 // pred_fallthru
      _
    // Predicated region
    $region6: #{_fwd.1} parent=1 // pred_check
      _
    $region7: #{_fwd.1} parent=1 // pred_check_branch
      %25 = sbr.rel (0) target = $region9
    $region8: #{_fwd.1} parent=1 // pred_region
      %s27 = ssub.s32 4096, 4096
      %28 = vsyncadd [#allocation3], %s27
      %s29 = sshll.u32 [#allocation2], 4
      %s30 = int_to_ptr.vmem [resolvable:$true] %s29
      %35 = dma.hbm_to_vmem [thread:$0]  %s1, 4096, %s30, [#allocation3], 128, 128, 8
    $region9: #{_fwd.1} parent=1 // pred_fallthru
      _
    // Predicated region
    $region10: #{_fwd.1} parent=1 // pred_check
      _
    $region11: #{_fwd.1} parent=1 // pred_check_branch
      %37 = sbr.rel (0) target = $region13
    $region12: #{_fwd.1} parent=1 // pred_region
      %s39 = ssub.s32 2048, 2048
      %40 = vsyncadd [#allocation6], %s39
      %s41 = sshll.u32 [#allocation5], 4
      %s42 = int_to_ptr.vmem [resolvable:$true] %s41
      %47 = dma.hbm_to_vmem [thread:$0]  %s2, 2048, %s42, [#allocation6], 128, 128, 8
    $region13: #{_fwd.1} parent=1 // pred_fallthru
      _
    // Predicated region
    $region14: #{_fwd.1} parent=1 // pred_check
      _
    $region15: #{_fwd.1} parent=1 // pred_check_branch
      %49 = sbr.rel (0) target = $region17
    $region16: #{_fwd.1} parent=1 // pred_region
      %s51 = ssub.s32 4096, 4096
      %52 = vsyncadd [#allocation6], %s51
      %s53 = sshll.u32 [#allocation7], 4
      %s54 = int_to_ptr.vmem [resolvable:$true] %s53
      %59 = dma.hbm_to_vmem [thread:$0]  %s3, 4096, %s54, [#allocation6], 256, 256, 16
    $region17: #{_fwd.1} parent=1 // pred_fallthru
      _
    // Predicated region
    $region18: #{_fwd.1} parent=1 // pred_check
      _
    $region19: #{_fwd.1} parent=1 // pred_check_branch
      %61 = sbr.rel (0) target = $region21
    $region20: #{_fwd.1} parent=1 // pred_region
      %s63 = ssub.s32 4096, 4096
      %64 = vsyncadd [#allocation9], %s63
      %s65 = sshll.u32 [#allocation8], 4
      %s66 = int_to_ptr.vmem [resolvable:$true] %s65
      %71 = dma.hbm_to_vmem [thread:$0]  %s4, 4096, %s66, [#allocation9], 128, 128, 8
    $region21: #{_fwd.1} parent=1 // pred_fallthru
      _
    // Predicated region
    $region22: #{_fwd.1} parent=1 // pred_check
      _
    $region23: #{_fwd.1} parent=1 // pred_check_branch
      %73 = sbr.rel (0) target = $region25
    $region24: #{_fwd.1} parent=1 // pred_region
      %s75 = ssub.s32 2048, 2048
      %76 = vsyncadd [#allocation9], %s75
      %s77 = sshll.u32 [#allocation10], 4
      %s78 = int_to_ptr.vmem [resolvable:$true] %s77
      %83 = dma.hbm_to_vmem [thread:$0]  %s5, 2048, %s78, [#allocation9], 128, 128, 8
    $region25: #{_fwd.1} parent=1 // pred_fallthru
      _
    // Predicated region
    $region26: #{_fwd.1} parent=1 // pred_check
      _
    $region27: #{_fwd.1} parent=1 // pred_check_branch
      %85 = sbr.rel (0) target = $region29
    $region28: #{_fwd.1} parent=1 // pred_region
      %s87 = ssub.s32 2048, 2048
      %88 = vsyncadd [#allocation12], %s87
      %s89 = sshll.u32 [#allocation11], 4
      %s90 = int_to_ptr.vmem [resolvable:$true] %s89
      %95 = dma.hbm_to_vmem [thread:$0]  %s6, 2048, %s90, [#allocation12], 128, 128, 8
    $region29: #{_fwd.1} parent=1 // pred_fallthru
      _
    // Predicated region
    $region30: #{_fwd.1} parent=1 // pred_check
      _
    $region31: #{_fwd.1} parent=1 // pred_check_branch
      %97 = sbr.rel (0) target = $region33
    $region32: #{_fwd.1} parent=1 // pred_region
      _
    $region33: #{_fwd.1} parent=1 // pred_fallthru
      _
    // Predicated region
    $region34: #{_fwd.1} parent=1 // pred_check
      _
    $region35: #{_fwd.1} parent=1 // pred_check_branch
      %99 = sbr.rel (0) target = $region37
    $region36: #{_fwd.1} parent=1 // pred_region
      %100 = dma.done [#allocation3], 4096
    $region37: #{_fwd.1} parent=1 // pred_fallthru
      _
    // Predicated region
    $region38: #{_fwd.1} parent=1 // pred_check
      _
    $region39: #{_fwd.1} parent=1 // pred_check_branch
      %102 = sbr.rel (0) target = $region41
    $region40: #{_fwd.1} parent=1 // pred_region
      %103 = dma.done [#allocation6], 2048
    $region41: #{_fwd.1} parent=1 // pred_fallthru
      _
    // Predicated region
    $region42: #{_fwd.1} parent=1 // pred_check
      _
    $region43: #{_fwd.1} parent=1 // pred_check_branch
      %105 = sbr.rel (0) target = $region45
    $region44: #{_fwd.1} parent=1 // pred_region
      %106 = dma.done [#allocation6], 4096
    $region45: #{_fwd.1} parent=1 // pred_fallthru
      _
    // Predicated region
    $region46: #{_fwd.1} parent=1 // pred_check
      _
    $region47: #{_fwd.1} parent=1 // pred_check_branch
      %108 = sbr.rel (0) target = $region49
    $region48: #{_fwd.1} parent=1 // pred_region
      %109 = dma.done [#allocation9], 4096
    $region49: #{_fwd.1} parent=1 // pred_fallthru
      _
    // Predicated region
    $region50: #{_fwd.1} parent=1 // pred_check
      _
    $region51: #{_fwd.1} parent=1 // pred_check_branch
      %111 = sbr.rel (0) target = $region53
    $region52: #{_fwd.1} parent=1 // pred_region
      %112 = dma.done [#allocation9], 2048
    $region53: #{_fwd.1} parent=1 // pred_fallthru
      _
    // Predicated region
    $region54: #{_fwd.1} parent=1 // pred_check
      _
    $region55: #{_fwd.1} parent=1 // pred_check_branch
      %114 = sbr.rel (0) target = $region57
    $region56: #{_fwd.1} parent=1 // pred_region
      %115 = dma.done [#allocation12], 2048
    $region57: #{_fwd.1} parent=1 // pred_fallthru
      _
    %v116 = vld [vmem:[%s0] sm:$0xff]
    %v117 = vld [vmem:[%s0 + $0x8] sm:$0xff]
    %v118 = vld [vmem:[%s0 + $0x10] sm:$0xff]
    %v119 = vld [vmem:[#allocation2] sm:$0xff]
    %v120 = vld [vmem:[#allocation2 + $0x8] sm:$0xff]
    %v121 = vld [vmem:[#allocation2 + $0x10] sm:$0xff]
    %v122 = vld [vmem:[#allocation2 + $0x18] sm:$0xff]
    %v123 = vld [vmem:[#allocation2 + $0x20] sm:$0xff]
    %v124 = vld [vmem:[#allocation2 + $0x28] sm:$0xff]
    %v125 = vld [vmem:[#allocation2 + $0x30] sm:$0xff]
    %v126 = vld [vmem:[#allocation2 + $0x38] sm:$0xff]
    %v127 = vld [vmem:[#allocation2 + $0x40] sm:$0xff]
    %v128 = vld [vmem:[#allocation2 + $0x48] sm:$0xff]
    %v129 = vld [vmem:[#allocation2 + $0x50] sm:$0xff]
    %v130 = vld [vmem:[#allocation2 + $0x58] sm:$0xff]
    %v131 = vld [vmem:[#allocation2 + $0x60] sm:$0xff]
    %v132 = vld [vmem:[#allocation2 + $0x68] sm:$0xff]
    %v133 = vld [vmem:[#allocation2 + $0x70] sm:$0xff]
    %v134 = vld [vmem:[#allocation2 + $0x78] sm:$0xff]
    %v135 = vld [vmem:[#allocation2 + $0x80] sm:$0xff]
    %v136 = vld [vmem:[#allocation2 + $0x88] sm:$0xff]
    %v137 = vld [vmem:[#allocation2 + $0x90] sm:$0xff]
    %v138 = vld [vmem:[#allocation2 + $0x98] sm:$0xff]
    %v139 = vld [vmem:[#allocation2 + $0xa0] sm:$0xff]
    %v140 = vld [vmem:[#allocation2 + $0xa8] sm:$0xff]
    %v141 = vld [vmem:[#allocation2 + $0xb0] sm:$0xff]
    %v142 = vld [vmem:[#allocation2 + $0xb8] sm:$0xff]
    %v143 = vld [vmem:[#allocation2 + $0xc0] sm:$0xff]
    %v144 = vld [vmem:[#allocation2 + $0xc8] sm:$0xff]
    %v145 = vld [vmem:[#allocation2 + $0xd0] sm:$0xff]
    %v146 = vld [vmem:[#allocation2 + $0xd8] sm:$0xff]
    %v147 = vld [vmem:[#allocation2 + $0xe0] sm:$0xff]
    %v148 = vld [vmem:[#allocation2 + $0xe8] sm:$0xff]
    %v149 = vld [vmem:[#allocation2 + $0xf0] sm:$0xff]
    %v150 = vld [vmem:[#allocation2 + $0xf8] sm:$0xff]
    %v151 = vld [vmem:[%s7] ss:$0 sm:$0xff]
    %152 = vmatprep.subr.mxu0 0.0
    %153 = vmatpush1.msra.mxu0 %v119
    %154 = vmatprep.subr.mxu0 0.0
    %155 = vmatpush1.msra.mxu0 %v120
    %156 = vmatprep.subr.mxu0 0.0
    %157 = vmatpush1.msra.mxu0 %v121
    %158 = vmatprep.subr.mxu0 0.0
    %159 = vmatpush1.msra.mxu0 %v122
    %160 = vmatprep.subr.mxu0 0.0
    %161 = vmatpush1.msra.mxu0 %v123
    %162 = vmatprep.subr.mxu0 0.0
    %163 = vmatpush1.msra.mxu0 %v124
    %164 = vmatprep.subr.mxu0 0.0
    %165 = vmatpush1.msra.mxu0 %v125
    %166 = vmatprep.subr.mxu0 0.0
    %167 = vmatpush1.msra.mxu0 %v126
    %168 = vmatprep.subr.mxu0 0.0
    %169 = vmatpush1.msra.mxu0 %v127
    %170 = vmatprep.subr.mxu0 0.0
    %171 = vmatpush1.msra.mxu0 %v128
    %172 = vmatprep.subr.mxu0 0.0
    %173 = vmatpush1.msra.mxu0 %v129
    %174 = vmatprep.subr.mxu0 0.0
    %175 = vmatpush1.msra.mxu0 %v130
    %176 = vmatprep.subr.mxu0 0.0
    %177 = vmatpush1.msra.mxu0 %v131
    %178 = vmatprep.subr.mxu0 0.0
    %179 = vmatpush1.msra.mxu0 %v132
    %180 = vmatprep.subr.mxu0 0.0
    %181 = vmatpush1.msra.mxu0 %v133
    %182 = vmatprep.subr.mxu0 0.0
    %183 = vmatpush1.msra.mxu0 %v134
    %184 = vmatprep.subr.mxu0 0.0
    %185 = vmatpush1.msra.mxu0 %v135
    %186 = vmatprep.subr.mxu0 0.0
    %187 = vmatpush1.msra.mxu0 %v136
    %188 = vmatprep.subr.mxu0 0.0
    %189 = vmatpush1.msra.mxu0 %v137
    %190 = vmatprep.subr.mxu0 0.0
    %191 = vmatpush1.msra.mxu0 %v138
    %192 = vmatprep.subr.mxu0 0.0
    %193 = vmatpush1.msra.mxu0 %v139
    %194 = vmatprep.subr.mxu0 0.0
    %195 = vmatpush1.msra.mxu0 %v140
    %196 = vmatprep.subr.mxu0 0.0
    %197 = vmatpush1.msra.mxu0 %v141
    %198 = vmatprep.subr.mxu0 0.0
    %199 = vmatpush1.msra.mxu0 %v142
    %200 = vmatprep.subr.mxu0 0.0
    %201 = vmatpush1.msra.mxu0 %v143
    %202 = vmatprep.subr.mxu0 0.0
    %203 = vmatpush1.msra.mxu0 %v144
    %204 = vmatprep.subr.mxu0 0.0
    %205 = vmatpush1.msra.mxu0 %v145
    %206 = vmatprep.subr.mxu0 0.0
    %207 = vmatpush1.msra.mxu0 %v146
    %208 = vmatprep.subr.mxu0 0.0
    %209 = vmatpush1.msra.mxu0 %v147
    %210 = vmatprep.subr.mxu0 0.0
    %211 = vmatpush1.msra.mxu0 %v148
    %212 = vmatprep.subr.mxu0 0.0
    %213 = vmatpush1.msra.mxu0 %v149
    %214 = vmatprep.subr.mxu0 0.0
    %215 = vmatpush1.msra.mxu0 %v150
    %216 = vmatprep.mubr.f32.mxu0 %v117
    %217 = vmatmul.mubr.f32.gmra.mrb[0].mxu0 %v116
    %v218 = vpop.f32.mrb[0].mxu0
    %v219 = vadd.f32 %v151, %v218
    %v220 = vpop.f32.mrb[0].mxu0
    %221 = vdwg.mxu0
    %v222 = vld [vmem:[%s7 + $0x1] ss:$0 sm:$0xff]
    %v223 = vld [vmem:[%s7 + $0x2] ss:$0 sm:$0xff]
    %224 = vadd.xlane.f32.xlu0 %v219
    %v225 = vpop.xlane.xlu0 %224
    %v226 = vmul.f32 %v225, 0.03125
    %v227 = vsub.f32 %v219, %v226
    %v228 = vmul.f32 %v227, %v227
    %229 = vadd.xlane.f32.xlu0 %v228
    %v230 = vpop.xlane.xlu0 %229
    %v231 = vmul.f32 %v226, %v226
    %v232 = vmul.f32 %v231, 96.0
    %v233 = vsub.f32 %v230, %v232
    %v234 = vmul.f32 %v233, 0.03125
    %v235 = vadd.f32 %v234, 1e-05
    %v236 = vrsqrt.pop %v235
    %v237 = vmul.f32 %v227, %v236
    %v238 = vmul.f32 %v237, %v222
    %v239 = vadd.f32 %v238, %v223
    %vm240 = vcmp.gt.f32.partialorder %v239, 0.0
    %v241 = vmin.f32 %v239, 0.0
    %v242 = vmul.f32 %v241, 1.442695
    %v243 = vpow.pop %v242
    %v244 = vsub.f32 %v243, 1.0
    %v245 = vsel %vm240, %v239, %v244
    %v246 = vld [vmem:[#allocation5] sm:$0xff]
    %v247 = vld [vmem:[#allocation5 + $0x8] sm:$0xff]
    %v248 = vld [vmem:[#allocation5 + $0x10] sm:$0xff]
    %v249 = vld [vmem:[#allocation5 + $0x18] sm:$0xff]
    %v250 = vld [vmem:[#allocation5 + $0x20] sm:$0xff]
    %v251 = vld [vmem:[#allocation5 + $0x28] sm:$0xff]
    %v252 = vld [vmem:[#allocation5 + $0x30] sm:$0xff]
    %v253 = vld [vmem:[#allocation5 + $0x38] sm:$0xff]
    %v254 = vld [vmem:[#allocation5 + $0x40] sm:$0xff]
    %v255 = vld [vmem:[#allocation5 + $0x48] sm:$0xff]
    %v256 = vld [vmem:[#allocation5 + $0x50] sm:$0xff]
    %v257 = vld [vmem:[#allocation5 + $0x58] sm:$0xff]
    %v258 = vld [vmem:[#allocation5 + $0x60] sm:$0xff]
    %v259 = vld [vmem:[#allocation5 + $0x68] sm:$0xff]
    %v260 = vld [vmem:[#allocation5 + $0x70] sm:$0xff]
    %v261 = vld [vmem:[#allocation5 + $0x78] sm:$0xff]
    %v262 = vld [vmem:[%s7 + $0x3] ss:$0 sm:$0xff]
    %263 = vmatprep.subr.mxu0 0.0
    %264 = vmatpush1.msra.mxu0 %v246
    %265 = vmatprep.subr.mxu0 0.0
    %266 = vmatpush1.msra.mxu0 %v247
    %267 = vmatprep.subr.mxu0 0.0
    %268 = vmatpush1.msra.mxu0 %v248
    %269 = vmatprep.subr.mxu0 0.0
    %270 = vmatpush1.msra.mxu0 %v249
    %271 = vmatprep.subr.mxu0 0.0
    %272 = vmatpush1.msra.mxu0 %v250
    %273 = vmatprep.subr.mxu0 0.0
    %274 = vmatpush1.msra.mxu0 %v251
    %275 = vmatprep.subr.mxu0 0.0
    %276 = vmatpush1.msra.mxu0 %v252
    %277 = vmatprep.subr.mxu0 0.0
    %278 = vmatpush1.msra.mxu0 %v253
    %279 = vmatprep.subr.mxu0 0.0
    %280 = vmatpush1.msra.mxu0 %v254
    %281 = vmatprep.subr.mxu0 0.0
    %282 = vmatpush1.msra.mxu0 %v255
    %283 = vmatprep.subr.mxu0 0.0
    %284 = vmatpush1.msra.mxu0 %v256
    %285 = vmatprep.subr.mxu0 0.0
    %286 = vmatpush1.msra.mxu0 %v257
    %287 = vmatprep.subr.mxu0 0.0
    %288 = vmatpush1.msra.mxu0 %v258
    %289 = vmatprep.subr.mxu0 0.0
    %290 = vmatpush1.msra.mxu0 %v259
    %291 = vmatprep.subr.mxu0 0.0
    %292 = vmatpush1.msra.mxu0 %v260
    %293 = vmatprep.subr.mxu0 0.0
    %294 = vmatpush1.msra.mxu0 %v261
    %295 = vmatprep.subr.mxu0 0.0
    %296 = vmatpush1.msra.mxu0 0.0
    %297 = vmatprep.subr.mxu0 0.0
    %298 = vmatpush1.msra.mxu0 0.0
    %299 = vmatprep.subr.mxu0 0.0
    %300 = vmatpush1.msra.mxu0 0.0
    %301 = vmatprep.subr.mxu0 0.0
    %302 = vmatpush1.msra.mxu0 0.0
    %303 = vmatprep.subr.mxu0 0.0
    %304 = vmatpush1.msra.mxu0 0.0
    %305 = vmatprep.subr.mxu0 0.0
    %306 = vmatpush1.msra.mxu0 0.0
    %307 = vmatprep.subr.mxu0 0.0
    %308 = vmatpush1.msra.mxu0 0.0
    %309 = vmatprep.subr.mxu0 0.0
    %310 = vmatpush1.msra.mxu0 0.0
    %311 = vmatprep.subr.mxu0 0.0
    %312 = vmatpush1.msra.mxu0 0.0
    %313 = vmatprep.subr.mxu0 0.0
    %314 = vmatpush1.msra.mxu0 0.0
    %315 = vmatprep.subr.mxu0 0.0
    %316 = vmatpush1.msra.mxu0 0.0
    %317 = vmatprep.subr.mxu0 0.0
    %318 = vmatpush1.msra.mxu0 0.0
    %319 = vmatprep.subr.mxu0 0.0
    %320 = vmatpush1.msra.mxu0 0.0
    %321 = vmatprep.subr.mxu0 0.0
    %322 = vmatpush1.msra.mxu0 0.0
    %323 = vmatprep.subr.mxu0 0.0
    %324 = vmatpush1.msra.mxu0 0.0
    %325 = vmatprep.subr.mxu0 0.0
    %326 = vmatpush1.msra.mxu0 0.0
    %327 = vmatprep.mubr.f32.mxu0 0.0
    %328 = vmatmul.mubr.f32.gmra.mrb[0].mxu0 %v245
    %v329 = vpop.f32.mrb[0].mxu0
    %v330 = vadd.f32 %v262, %v329
    %v331 = vpop.f32.mrb[0].mxu0
    %332 = vdwg.mxu0
    %v333 = vld [vmem:[%s7 + $0x4] ss:$0 sm:$0xff]
    %v334 = vld [vmem:[%s7 + $0x5] ss:$0 sm:$0xff]
    %335 = vadd.xlane.f32.xlu0 %v330
    %v336 = vpop.xlane.xlu0 %335
    %v337 = vmul.f32 %v336, 0.0625
    %v338 = vsub.f32 %v330, %v337
    %v339 = vmul.f32 %v338, %v338
    %340 = vadd.xlane.f32.xlu0 %v339
    %v341 = vpop.xlane.xlu0 %340
    %v342 = vmul.f32 %v337, %v337
    %v343 = vmul.f32 %v342, 112.0
    %v344 = vsub.f32 %v341, %v343
    %v345 = vmul.f32 %v344, 0.0625
    %v346 = vadd.f32 %v345, 1e-05
    %v347 = vrsqrt.pop %v346
    %v348 = vmul.f32 %v338, %v347
    %v349 = vmul.f32 %v348, %v333
    %v350 = vadd.f32 %v349, %v334
    %vm351 = vcmp.gt.f32.partialorder %v350, 0.0
    %v352 = vmin.f32 %v350, 0.0
    %v353 = vmul.f32 %v352, 1.442695
    %v354 = vpow.pop %v353
    %v355 = vsub.f32 %v354, 1.0
    %v356 = vsel %vm351, %v350, %v355
    %v357 = vld [vmem:[#allocation7] sm:$0xff]
    %v358 = vld [vmem:[#allocation7 + $0x8] sm:$0xff]
    %v359 = vld [vmem:[#allocation7 + $0x10] sm:$0xff]
    %v360 = vld [vmem:[#allocation7 + $0x18] sm:$0xff]
    %v361 = vld [vmem:[#allocation7 + $0x20] sm:$0xff]
    %v362 = vld [vmem:[#allocation7 + $0x28] sm:$0xff]
    %v363 = vld [vmem:[#allocation7 + $0x30] sm:$0xff]
    %v364 = vld [vmem:[#allocation7 + $0x38] sm:$0xff]
    %v365 = vld [vmem:[#allocation7 + $0x40] sm:$0xff]
    %v366 = vld [vmem:[#allocation7 + $0x48] sm:$0xff]
    %v367 = vld [vmem:[#allocation7 + $0x50] sm:$0xff]
    %v368 = vld [vmem:[#allocation7 + $0x58] sm:$0xff]
    %v369 = vld [vmem:[#allocation7 + $0x60] sm:$0xff]
    %v370 = vld [vmem:[#allocation7 + $0x68] sm:$0xff]
    %v371 = vld [vmem:[#allocation7 + $0x70] sm:$0xff]
    %v372 = vld [vmem:[#allocation7 + $0x78] sm:$0xff]
    %v373 = vld [vmem:[#allocation7 + $0x80] sm:$0xff]
    %v374 = vld [vmem:[#allocation7 + $0x88] sm:$0xff]
    %v375 = vld [vmem:[#allocation7 + $0x90] sm:$0xff]
    %v376 = vld [vmem:[#allocation7 + $0x98] sm:$0xff]
    %v377 = vld [vmem:[#allocation7 + $0xa0] sm:$0xff]
    %v378 = vld [vmem:[#allocation7 + $0xa8] sm:$0xff]
    %v379 = vld [vmem:[#allocation7 + $0xb0] sm:$0xff]
    %v380 = vld [vmem:[#allocation7 + $0xb8] sm:$0xff]
    %v381 = vld [vmem:[#allocation7 + $0xc0] sm:$0xff]
    %v382 = vld [vmem:[#allocation7 + $0xc8] sm:$0xff]
    %v383 = vld [vmem:[#allocation7 + $0xd0] sm:$0xff]
    %v384 = vld [vmem:[#allocation7 + $0xd8] sm:$0xff]
    %v385 = vld [vmem:[#allocation7 + $0xe0] sm:$0xff]
    %v386 = vld [vmem:[#allocation7 + $0xe8] sm:$0xff]
    %v387 = vld [vmem:[#allocation7 + $0xf0] sm:$0xff]
    %v388 = vld [vmem:[#allocation7 + $0xf8] sm:$0xff]
    %s389 = scalar_lea.vmem %s7, 6
    %v390 = vld [vmem:[%s389] ss:$8 sm:$0x3]
    %v392 = vlaneseq
    %v393 = vshrl.u32 %v392, 7
    %v394 = vsub.s32 0, %v393
    %v395 = vrot.slane %v390, %v394
    %v396 = vlaneseq
    %v397 = vshrl.u32 %v396, 7
    %v398 = vsub.s32 1, %v397
    %v399 = vrot.slane %v390, %v398
    %402 = vmatprep.subr.mxu0 %v358
    %403 = vmatpush1.msra.mxu0 %v357
    %404 = vmatprep.subr.mxu0 %v360
    %405 = vmatpush1.msra.mxu0 %v359
    %406 = vmatprep.subr.mxu0 %v362
    %407 = vmatpush1.msra.mxu0 %v361
    %408 = vmatprep.subr.mxu0 %v364
    %409 = vmatpush1.msra.mxu0 %v363
    %410 = vmatprep.subr.mxu0 %v366
    %411 = vmatpush1.msra.mxu0 %v365
    %412 = vmatprep.subr.mxu0 %v368
    %413 = vmatpush1.msra.mxu0 %v367
    %414 = vmatprep.subr.mxu0 %v370
    %415 = vmatpush1.msra.mxu0 %v369
    %416 = vmatprep.subr.mxu0 %v372
    %417 = vmatpush1.msra.mxu0 %v371
    %418 = vmatprep.subr.mxu0 %v374
    %419 = vmatpush1.msra.mxu0 %v373
    %420 = vmatprep.subr.mxu0 %v376
    %421 = vmatpush1.msra.mxu0 %v375
    %422 = vmatprep.subr.mxu0 %v378
    %423 = vmatpush1.msra.mxu0 %v377
    %424 = vmatprep.subr.mxu0 %v380
    %425 = vmatpush1.msra.mxu0 %v379
    %426 = vmatprep.subr.mxu0 %v382
    %427 = vmatpush1.msra.mxu0 %v381
    %428 = vmatprep.subr.mxu0 %v384
    %429 = vmatpush1.msra.mxu0 %v383
    %430 = vmatprep.subr.mxu0 %v386
    %431 = vmatpush1.msra.mxu0 %v385
    %432 = vmatprep.subr.mxu0 %v388
    %433 = vmatpush1.msra.mxu0 %v387
    %434 = vmatprep.subr.mxu0 0.0
    %435 = vmatpush1.msra.mxu0 0.0
    %436 = vmatprep.subr.mxu0 0.0
    %437 = vmatpush1.msra.mxu0 0.0
    %438 = vmatprep.subr.mxu0 0.0
    %439 = vmatpush1.msra.mxu0 0.0
    %440 = vmatprep.subr.mxu0 0.0
    %441 = vmatpush1.msra.mxu0 0.0
    %442 = vmatprep.subr.mxu0 0.0
    %443 = vmatpush1.msra.mxu0 0.0
    %444 = vmatprep.subr.mxu0 0.0
    %445 = vmatpush1.msra.mxu0 0.0
    %446 = vmatprep.subr.mxu0 0.0
    %447 = vmatpush1.msra.mxu0 0.0
    %448 = vmatprep.subr.mxu0 0.0
    %449 = vmatpush1.msra.mxu0 0.0
    %450 = vmatprep.subr.mxu0 0.0
    %451 = vmatpush1.msra.mxu0 0.0
    %452 = vmatprep.subr.mxu0 0.0
    %453 = vmatpush1.msra.mxu0 0.0
    %454 = vmatprep.subr.mxu0 0.0
    %455 = vmatpush1.msra.mxu0 0.0
    %456 = vmatprep.subr.mxu0 0.0
    %457 = vmatpush1.msra.mxu0 0.0
    %458 = vmatprep.subr.mxu0 0.0
    %459 = vmatpush1.msra.mxu0 0.0
    %460 = vmatprep.subr.mxu0 0.0
    %461 = vmatpush1.msra.mxu0 0.0
    %462 = vmatprep.subr.mxu0 0.0
    %463 = vmatpush1.msra.mxu0 0.0
    %464 = vmatprep.subr.mxu0 0.0
    %465 = vmatpush1.msra.mxu0 0.0
    %466 = vmatprep.mubr.f32.mxu0 0.0
    %467 = vmatmul.mubr.f32.gmra.mrb[0].mxu0 %v356
    %v468 = vpop.f32.mrb[0].mxu0
    %v469 = vadd.f32 %v395, %v468
    %v470 = vpop.f32.mrb[0].mxu0
    %v471 = vadd.f32 %v399, %v470
    %472 = vdwg.mxu0
    %v473 = vmul.f32 %v471, 0.5
    %v474 = vmul.f32 %v473, 1.442695
    %v475 = vpow.pop %v474
    %v476 = vmul.f32 %v118, %v475
    %v477 = vadd.f32 %v469, %v476
    %v478 = vld [vmem:[#allocation8] sm:$0xff]
    %v479 = vld [vmem:[#allocation8 + $0x8] sm:$0xff]
    %v480 = vld [vmem:[#allocation8 + $0x10] sm:$0xff]
    %v481 = vld [vmem:[#allocation8 + $0x18] sm:$0xff]
    %v482 = vld [vmem:[#allocation8 + $0x20] sm:$0xff]
    %v483 = vld [vmem:[#allocation8 + $0x28] sm:$0xff]
    %v484 = vld [vmem:[#allocation8 + $0x30] sm:$0xff]
    %v485 = vld [vmem:[#allocation8 + $0x38] sm:$0xff]
    %v486 = vld [vmem:[#allocation8 + $0x40] sm:$0xff]
    %v487 = vld [vmem:[#allocation8 + $0x48] sm:$0xff]
    %v488 = vld [vmem:[#allocation8 + $0x50] sm:$0xff]
    %v489 = vld [vmem:[#allocation8 + $0x58] sm:$0xff]
    %v490 = vld [vmem:[#allocation8 + $0x60] sm:$0xff]
    %v491 = vld [vmem:[#allocation8 + $0x68] sm:$0xff]
    %v492 = vld [vmem:[#allocation8 + $0x70] sm:$0xff]
    %v493 = vld [vmem:[#allocation8 + $0x78] sm:$0xff]
    %v494 = vld [vmem:[#allocation8 + $0x80] sm:$0xff]
    %v495 = vld [vmem:[#allocation8 + $0x88] sm:$0xff]
    %v496 = vld [vmem:[#allocation8 + $0x90] sm:$0xff]
    %v497 = vld [vmem:[#allocation8 + $0x98] sm:$0xff]
    %v498 = vld [vmem:[#allocation8 + $0xa0] sm:$0xff]
    %v499 = vld [vmem:[#allocation8 + $0xa8] sm:$0xff]
    %v500 = vld [vmem:[#allocation8 + $0xb0] sm:$0xff]
    %v501 = vld [vmem:[#allocation8 + $0xb8] sm:$0xff]
    %v502 = vld [vmem:[#allocation8 + $0xc0] sm:$0xff]
    %v503 = vld [vmem:[#allocation8 + $0xc8] sm:$0xff]
    %v504 = vld [vmem:[#allocation8 + $0xd0] sm:$0xff]
    %v505 = vld [vmem:[#allocation8 + $0xd8] sm:$0xff]
    %v506 = vld [vmem:[#allocation8 + $0xe0] sm:$0xff]
    %v507 = vld [vmem:[#allocation8 + $0xe8] sm:$0xff]
    %v508 = vld [vmem:[#allocation8 + $0xf0] sm:$0xff]
    %v509 = vld [vmem:[#allocation8 + $0xf8] sm:$0xff]
    %510 = vmatprep.subr.mxu0 0.0
    %511 = vmatpush1.msra.mxu0 %v494
    %512 = vmatprep.subr.mxu0 0.0
    %513 = vmatpush1.msra.mxu0 %v495
    %514 = vmatprep.subr.mxu0 0.0
    %515 = vmatpush1.msra.mxu0 %v496
    %516 = vmatprep.subr.mxu0 0.0
    %517 = vmatpush1.msra.mxu0 %v497
    %518 = vmatprep.subr.mxu0 0.0
    %519 = vmatpush1.msra.mxu0 %v498
    %520 = vmatprep.subr.mxu0 0.0
    %521 = vmatpush1.msra.mxu0 %v499
    %522 = vmatprep.subr.mxu0 0.0
    %523 = vmatpush1.msra.mxu0 %v500
    %524 = vmatprep.subr.mxu0 0.0
    %525 = vmatpush1.msra.mxu0 %v501
    %526 = vmatprep.subr.mxu0 0.0
    %527 = vmatpush1.msra.mxu0 %v502
    %528 = vmatprep.subr.mxu0 0.0
    %529 = vmatpush1.msra.mxu0 %v503
    %530 = vmatprep.subr.mxu0 0.0
    %531 = vmatpush1.msra.mxu0 %v504
    %532 = vmatprep.subr.mxu0 0.0
    %533 = vmatpush1.msra.mxu0 %v505
    %534 = vmatprep.subr.mxu0 0.0
    %535 = vmatpush1.msra.mxu0 %v506
    %536 = vmatprep.subr.mxu0 0.0
    %537 = vmatpush1.msra.mxu0 %v507
    %538 = vmatprep.subr.mxu0 0.0
    %539 = vmatpush1.msra.mxu0 %v508
    %540 = vmatprep.subr.mxu0 0.0
    %541 = vmatpush1.msra.mxu0 %v509
    %542 = vmatprep.subr.mxu0 0.0
    %543 = vmatpush1.msra.mxu0 0.0
    %544 = vmatprep.subr.mxu0 0.0
    %545 = vmatpush1.msra.mxu0 0.0
    %546 = vmatprep.subr.mxu0 0.0
    %547 = vmatpush1.msra.mxu0 0.0
    %548 = vmatprep.subr.mxu0 0.0
    %549 = vmatpush1.msra.mxu0 0.0
    %550 = vmatprep.subr.mxu0 0.0
    %551 = vmatpush1.msra.mxu0 0.0
    %552 = vmatprep.subr.mxu0 0.0
    %553 = vmatpush1.msra.mxu0 0.0
    %554 = vmatprep.subr.mxu0 0.0
    %555 = vmatpush1.msra.mxu0 0.0
    %556 = vmatprep.subr.mxu0 0.0
    %557 = vmatpush1.msra.mxu0 0.0
    %558 = vmatprep.subr.mxu0 0.0
    %559 = vmatpush1.msra.mxu0 0.0
    %560 = vmatprep.subr.mxu0 0.0
    %561 = vmatpush1.msra.mxu0 0.0
    %562 = vmatprep.subr.mxu0 0.0
    %563 = vmatpush1.msra.mxu0 0.0
    %564 = vmatprep.subr.mxu0 0.0
    %565 = vmatpush1.msra.mxu0 0.0
    %566 = vmatprep.subr.mxu0 0.0
    %567 = vmatpush1.msra.mxu0 0.0
    %568 = vmatprep.subr.mxu0 0.0
    %569 = vmatpush1.msra.mxu0 0.0
    %570 = vmatprep.subr.mxu0 0.0
    %571 = vmatpush1.msra.mxu0 0.0
    %572 = vmatprep.subr.mxu0 0.0
    %573 = vmatpush1.msra.mxu0 0.0
    %574 = vmatprep.mubr.f32.mxu0 0.0
    %575 = vmatmul.mubr.f32.gmra.mrb[0].mxu0 %v117
    %v576 = vpop.f32.mrb[0].mxu0
    %v577 = vadd.f32 0.0, %v576
    %v578 = vpop.f32.mrb[0].mxu0
    %579 = vdwg.mxu0
    %580 = vmatprep.subr.mxu0 0.0
    %581 = vmatpush1.msra.mxu0 %v478
    %582 = vmatprep.subr.mxu0 0.0
    %583 = vmatpush1.msra.mxu0 %v479
    %584 = vmatprep.subr.mxu0 0.0
    %585 = vmatpush1.msra.mxu0 %v480
    %586 = vmatprep.subr.mxu0 0.0
    %587 = vmatpush1.msra.mxu0 %v481
    %588 = vmatprep.subr.mxu0 0.0
    %589 = vmatpush1.msra.mxu0 %v482
    %590 = vmatprep.subr.mxu0 0.0
    %591 = vmatpush1.msra.mxu0 %v483
    %592 = vmatprep.subr.mxu0 0.0
    %593 = vmatpush1.msra.mxu0 %v484
    %594 = vmatprep.subr.mxu0 0.0
    %595 = vmatpush1.msra.mxu0 %v485
    %596 = vmatprep.subr.mxu0 0.0
    %597 = vmatpush1.msra.mxu0 %v486
    %598 = vmatprep.subr.mxu0 0.0
    %599 = vmatpush1.msra.mxu0 %v487
    %600 = vmatprep.subr.mxu0 0.0
    %601 = vmatpush1.msra.mxu0 %v488
    %602 = vmatprep.subr.mxu0 0.0
    %603 = vmatpush1.msra.mxu0 %v489
    %604 = vmatprep.subr.mxu0 0.0
    %605 = vmatpush1.msra.mxu0 %v490
    %606 = vmatprep.subr.mxu0 0.0
    %607 = vmatpush1.msra.mxu0 %v491
    %608 = vmatprep.subr.mxu0 0.0
    %609 = vmatpush1.msra.mxu0 %v492
    %610 = vmatprep.subr.mxu0 0.0
    %611 = vmatpush1.msra.mxu0 %v493
    %612 = vmatprep.subr.mxu0 0.0
    %613 = vmatpush1.msra.mxu0 0.0
    %614 = vmatprep.subr.mxu0 0.0
    %615 = vmatpush1.msra.mxu0 0.0
    %616 = vmatprep.subr.mxu0 0.0
    %617 = vmatpush1.msra.mxu0 0.0
    %618 = vmatprep.subr.mxu0 0.0
    %619 = vmatpush1.msra.mxu0 0.0
    %620 = vmatprep.subr.mxu0 0.0
    %621 = vmatpush1.msra.mxu0 0.0
    %622 = vmatprep.subr.mxu0 0.0
    %623 = vmatpush1.msra.mxu0 0.0
    %624 = vmatprep.subr.mxu0 0.0
    %625 = vmatpush1.msra.mxu0 0.0
    %626 = vmatprep.subr.mxu0 0.0
    %627 = vmatpush1.msra.mxu0 0.0
    %628 = vmatprep.subr.mxu0 0.0
    %629 = vmatpush1.msra.mxu0 0.0
    %630 = vmatprep.subr.mxu0 0.0
    %631 = vmatpush1.msra.mxu0 0.0
    %632 = vmatprep.subr.mxu0 0.0
    %633 = vmatpush1.msra.mxu0 0.0
    %634 = vmatprep.subr.mxu0 0.0
    %635 = vmatpush1.msra.mxu0 0.0
    %636 = vmatprep.subr.mxu0 0.0
    %637 = vmatpush1.msra.mxu0 0.0
    %638 = vmatprep.subr.mxu0 0.0
    %639 = vmatpush1.msra.mxu0 0.0
    %640 = vmatprep.subr.mxu0 0.0
    %641 = vmatpush1.msra.mxu0 0.0
    %642 = vmatprep.subr.mxu0 0.0
    %643 = vmatpush1.msra.mxu0 0.0
    %644 = vmatprep.mubr.f32.mxu0 0.0
    %645 = vmatmul.mubr.f32.gmra.mrb[0].mxu0 %v477
    %v646 = vpop.f32.mrb[0].mxu0
    %v647 = vadd.f32 %v577, %v646
    %v648 = vpop.f32.mrb[0].mxu0
    %649 = vdwg.mxu0
    %v650 = vld [vmem:[%s7 + $0x7] ss:$0 sm:$0xff]
    %v651 = vadd.f32 %v647, %v650
    %v652 = vld [vmem:[%s7 + $0x10] ss:$0 sm:$0xff]
    %v653 = vld [vmem:[%s7 + $0x11] ss:$0 sm:$0xff]
    %654 = vadd.xlane.f32.xlu0 %v651
    %v655 = vpop.xlane.xlu0 %654
    %v656 = vmul.f32 %v655, 0.0625
    %v657 = vsub.f32 %v651, %v656
    %v658 = vmul.f32 %v657, %v657
    %659 = vadd.xlane.f32.xlu0 %v658
    %v660 = vpop.xlane.xlu0 %659
    %v661 = vmul.f32 %v656, %v656
    %v662 = vmul.f32 %v661, 112.0
    %v663 = vsub.f32 %v660, %v662
    %v664 = vmul.f32 %v663, 0.0625
    %v665 = vadd.f32 %v664, 1e-05
    %v666 = vrsqrt.pop %v665
    %v667 = vmul.f32 %v657, %v666
    %v668 = vmul.f32 %v667, %v652
    %v669 = vadd.f32 %v668, %v653
    %vm670 = vcmp.gt.f32.partialorder %v669, 0.0
    %v671 = vmin.f32 %v669, 0.0
    %v672 = vmul.f32 %v671, 1.442695
    %v673 = vpow.pop %v672
    %v674 = vsub.f32 %v673, 1.0
    %v675 = vsel %vm670, %v669, %v674
    %v676 = vld [vmem:[#allocation10] sm:$0xff]
    %v677 = vld [vmem:[#allocation10 + $0x8] sm:$0xff]
    %v678 = vld [vmem:[#allocation10 + $0x10] sm:$0xff]
    %v679 = vld [vmem:[#allocation10 + $0x18] sm:$0xff]
    %v680 = vld [vmem:[#allocation10 + $0x20] sm:$0xff]
    %v681 = vld [vmem:[#allocation10 + $0x28] sm:$0xff]
    %v682 = vld [vmem:[#allocation10 + $0x30] sm:$0xff]
    %v683 = vld [vmem:[#allocation10 + $0x38] sm:$0xff]
    %v684 = vld [vmem:[#allocation10 + $0x40] sm:$0xff]
    %v685 = vld [vmem:[#allocation10 + $0x48] sm:$0xff]
    %v686 = vld [vmem:[#allocation10 + $0x50] sm:$0xff]
    %v687 = vld [vmem:[#allocation10 + $0x58] sm:$0xff]
    %v688 = vld [vmem:[#allocation10 + $0x60] sm:$0xff]
    %v689 = vld [vmem:[#allocation10 + $0x68] sm:$0xff]
    %v690 = vld [vmem:[#allocation10 + $0x70] sm:$0xff]
    %v691 = vld [vmem:[#allocation10 + $0x78] sm:$0xff]
    %v692 = vld [vmem:[%s7 + $0x12] ss:$0 sm:$0xff]
    %693 = vmatprep.subr.mxu0 0.0
    %694 = vmatpush1.msra.mxu0 %v676
    %695 = vmatprep.subr.mxu0 0.0
    %696 = vmatpush1.msra.mxu0 %v677
    %697 = vmatprep.subr.mxu0 0.0
    %698 = vmatpush1.msra.mxu0 %v678
    %699 = vmatprep.subr.mxu0 0.0
    %700 = vmatpush1.msra.mxu0 %v679
    %701 = vmatprep.subr.mxu0 0.0
    %702 = vmatpush1.msra.mxu0 %v680
    %703 = vmatprep.subr.mxu0 0.0
    %704 = vmatpush1.msra.mxu0 %v681
    %705 = vmatprep.subr.mxu0 0.0
    %706 = vmatpush1.msra.mxu0 %v682
    %707 = vmatprep.subr.mxu0 0.0
    %708 = vmatpush1.msra.mxu0 %v683
    %709 = vmatprep.subr.mxu0 0.0
    %710 = vmatpush1.msra.mxu0 %v684
    %711 = vmatprep.subr.mxu0 0.0
    %712 = vmatpush1.msra.mxu0 %v685
    %713 = vmatprep.subr.mxu0 0.0
    %714 = vmatpush1.msra.mxu0 %v686
    %715 = vmatprep.subr.mxu0 0.0
    %716 = vmatpush1.msra.mxu0 %v687
    %717 = vmatprep.subr.mxu0 0.0
    %718 = vmatpush1.msra.mxu0 %v688
    %719 = vmatprep.subr.mxu0 0.0
    %720 = vmatpush1.msra.mxu0 %v689
    %721 = vmatprep.subr.mxu0 0.0
    %722 = vmatpush1.msra.mxu0 %v690
    %723 = vmatprep.subr.mxu0 0.0
    %724 = vmatpush1.msra.mxu0 %v691
    %725 = vmatprep.subr.mxu0 0.0
    %726 = vmatpush1.msra.mxu0 0.0
    %727 = vmatprep.subr.mxu0 0.0
    %728 = vmatpush1.msra.mxu0 0.0
    %729 = vmatprep.subr.mxu0 0.0
    %730 = vmatpush1.msra.mxu0 0.0
    %731 = vmatprep.subr.mxu0 0.0
    %732 = vmatpush1.msra.mxu0 0.0
    %733 = vmatprep.subr.mxu0 0.0
    %734 = vmatpush1.msra.mxu0 0.0
    %735 = vmatprep.subr.mxu0 0.0
    %736 = vmatpush1.msra.mxu0 0.0
    %737 = vmatprep.subr.mxu0 0.0
    %738 = vmatpush1.msra.mxu0 0.0
    %739 = vmatprep.subr.mxu0 0.0
    %740 = vmatpush1.msra.mxu0 0.0
    %741 = vmatprep.subr.mxu0 0.0
    %742 = vmatpush1.msra.mxu0 0.0
    %743 = vmatprep.subr.mxu0 0.0
    %744 = vmatpush1.msra.mxu0 0.0
    %745 = vmatprep.subr.mxu0 0.0
    %746 = vmatpush1.msra.mxu0 0.0
    %747 = vmatprep.subr.mxu0 0.0
    %748 = vmatpush1.msra.mxu0 0.0
    %749 = vmatprep.subr.mxu0 0.0
    %750 = vmatpush1.msra.mxu0 0.0
    %751 = vmatprep.subr.mxu0 0.0
    %752 = vmatpush1.msra.mxu0 0.0
    %753 = vmatprep.subr.mxu0 0.0
    %754 = vmatpush1.msra.mxu0 0.0
    %755 = vmatprep.subr.mxu0 0.0
    %756 = vmatpush1.msra.mxu0 0.0
    %757 = vmatprep.mubr.f32.mxu0 0.0
    %758 = vmatmul.mubr.f32.gmra.mrb[0].mxu0 %v675
    %v759 = vpop.f32.mrb[0].mxu0
    %v760 = vadd.f32 %v692, %v759
    %v761 = vpop.f32.mrb[0].mxu0
    %762 = vdwg.mxu0
    %v763 = vld [vmem:[%s7 + $0x13] ss:$0 sm:$0xff]
    %v764 = vld [vmem:[%s7 + $0x14] ss:$0 sm:$0xff]
    %765 = vadd.xlane.f32.xlu0 %v760
    %v766 = vpop.xlane.xlu0 %765
    %v767 = vmul.f32 %v766, 0.03125
    %v768 = vsub.f32 %v760, %v767
    %v769 = vmul.f32 %v768, %v768
    %770 = vadd.xlane.f32.xlu0 %v769
    %v771 = vpop.xlane.xlu0 %770
    %v772 = vmul.f32 %v767, %v767
    %v773 = vmul.f32 %v772, 96.0
    %v774 = vsub.f32 %v771, %v773
    %v775 = vmul.f32 %v774, 0.03125
    %v776 = vadd.f32 %v775, 1e-05
    %v777 = vrsqrt.pop %v776
    %v778 = vmul.f32 %v768, %v777
    %v779 = vmul.f32 %v778, %v763
    %v780 = vadd.f32 %v779, %v764
    %vm781 = vcmp.gt.f32.partialorder %v780, 0.0
    %v782 = vmin.f32 %v780, 0.0
    %v783 = vmul.f32 %v782, 1.442695
    %v784 = vpow.pop %v783
    %v785 = vsub.f32 %v784, 1.0
    %v786 = vsel %vm781, %v780, %v785
    %v787 = vld [vmem:[#allocation11] sm:$0xff]
    %v788 = vld [vmem:[#allocation11 + $0x8] sm:$0xff]
    %v789 = vld [vmem:[#allocation11 + $0x10] sm:$0xff]
    %v790 = vld [vmem:[#allocation11 + $0x18] sm:$0xff]
    %v791 = vld [vmem:[#allocation11 + $0x20] sm:$0xff]
    %v792 = vld [vmem:[#allocation11 + $0x28] sm:$0xff]
    %v793 = vld [vmem:[#allocation11 + $0x30] sm:$0xff]
    %v794 = vld [vmem:[#allocation11 + $0x38] sm:$0xff]
    %v795 = vld [vmem:[#allocation11 + $0x40] sm:$0xff]
    %v796 = vld [vmem:[#allocation11 + $0x48] sm:$0xff]
    %v797 = vld [vmem:[#allocation11 + $0x50] sm:$0xff]
    %v798 = vld [vmem:[#allocation11 + $0x58] sm:$0xff]
    %v799 = vld [vmem:[#allocation11 + $0x60] sm:$0xff]
    %v800 = vld [vmem:[#allocation11 + $0x68] sm:$0xff]
    %v801 = vld [vmem:[#allocation11 + $0x70] sm:$0xff]
    %v802 = vld [vmem:[#allocation11 + $0x78] sm:$0xff]
    %v803 = vld [vmem:[%s7 + $0x15] ss:$0 sm:$0xff]
    %804 = vmatprep.subr.mxu0 0.0
    %805 = vmatpush1.msra.mxu0 %v787
    %806 = vmatprep.subr.mxu0 0.0
    %807 = vmatpush1.msra.mxu0 %v788
    %808 = vmatprep.subr.mxu0 0.0
    %809 = vmatpush1.msra.mxu0 %v789
    %810 = vmatprep.subr.mxu0 0.0
    %811 = vmatpush1.msra.mxu0 %v790
    %812 = vmatprep.subr.mxu0 0.0
    %813 = vmatpush1.msra.mxu0 %v791
    %814 = vmatprep.subr.mxu0 0.0
    %815 = vmatpush1.msra.mxu0 %v792
    %816 = vmatprep.subr.mxu0 0.0
    %817 = vmatpush1.msra.mxu0 %v793
    %818 = vmatprep.subr.mxu0 0.0
    %819 = vmatpush1.msra.mxu0 %v794
    %820 = vmatprep.subr.mxu0 0.0
    %821 = vmatpush1.msra.mxu0 %v795
    %822 = vmatprep.subr.mxu0 0.0
    %823 = vmatpush1.msra.mxu0 %v796
    %824 = vmatprep.subr.mxu0 0.0
    %825 = vmatpush1.msra.mxu0 %v797
    %826 = vmatprep.subr.mxu0 0.0
    %827 = vmatpush1.msra.mxu0 %v798
    %828 = vmatprep.subr.mxu0 0.0
    %829 = vmatpush1.msra.mxu0 %v799
    %830 = vmatprep.subr.mxu0 0.0
    %831 = vmatpush1.msra.mxu0 %v800
    %832 = vmatprep.subr.mxu0 0.0
    %833 = vmatpush1.msra.mxu0 %v801
    %834 = vmatprep.subr.mxu0 0.0
    %835 = vmatpush1.msra.mxu0 %v802
    %836 = vmatprep.subr.mxu0 0.0
    %837 = vmatpush1.msra.mxu0 0.0
    %838 = vmatprep.subr.mxu0 0.0
    %839 = vmatpush1.msra.mxu0 0.0
    %840 = vmatprep.subr.mxu0 0.0
    %841 = vmatpush1.msra.mxu0 0.0
    %842 = vmatprep.subr.mxu0 0.0
    %843 = vmatpush1.msra.mxu0 0.0
    %844 = vmatprep.subr.mxu0 0.0
    %845 = vmatpush1.msra.mxu0 0.0
    %846 = vmatprep.subr.mxu0 0.0
    %847 = vmatpush1.msra.mxu0 0.0
    %848 = vmatprep.subr.mxu0 0.0
    %849 = vmatpush1.msra.mxu0 0.0
    %850 = vmatprep.subr.mxu0 0.0
    %851 = vmatpush1.msra.mxu0 0.0
    %852 = vmatprep.subr.mxu0 0.0
    %853 = vmatpush1.msra.mxu0 0.0
    %854 = vmatprep.subr.mxu0 0.0
    %855 = vmatpush1.msra.mxu0 0.0
    %856 = vmatprep.subr.mxu0 0.0
    %857 = vmatpush1.msra.mxu0 0.0
    %858 = vmatprep.subr.mxu0 0.0
    %859 = vmatpush1.msra.mxu0 0.0
    %860 = vmatprep.subr.mxu0 0.0
    %861 = vmatpush1.msra.mxu0 0.0
    %862 = vmatprep.subr.mxu0 0.0
    %863 = vmatpush1.msra.mxu0 0.0
    %864 = vmatprep.subr.mxu0 0.0
    %865 = vmatpush1.msra.mxu0 0.0
    %866 = vmatprep.subr.mxu0 0.0
    %867 = vmatpush1.msra.mxu0 0.0
    %868 = vmatprep.mubr.f32.mxu0 0.0
    %869 = vmatmul.mubr.f32.gmra.mrb[0].mxu0 %v786
    %v870 = vpop.f32.mrb[0].mxu0
    %v871 = vadd.f32 %v803, %v870
    %v872 = vpop.f32.mrb[0].mxu0
    %873 = vdwg.mxu0
    %874 = vst [vmem:[#allocation13] sm:$0xff] %v871
    %875 = vst [vmem:[#allocation14] sm:$0xff] %v469
    %876 = vst [vmem:[#allocation16] sm:$0xff] %v471
    // Predicated region
    $region58: #{_fwd.1} parent=1 // pred_check
      _
    $region59: #{_fwd.1} parent=1 // pred_check_branch
      %878 = sbr.rel (0) target = $region61
    $region60: #{_fwd.1} parent=1 // pred_region
      %s880 = ssub.s32 128, 128
      %881 = vsyncadd [#allocation4], %s880
      %s883 = sshll.u32 [#allocation13], 4
      %s884 = int_to_ptr.vmem [resolvable:$true] %s883
      %886 = dma.vmem_to_hbm [thread:$0]  %s884, 128, %s8, [#allocation4]
    $region61: #{_fwd.1} parent=1 // pred_fallthru
      _
    // Predicated region
    $region62: #{_fwd.1} parent=1 // pred_check
      _
    $region63: #{_fwd.1} parent=1 // pred_check_branch
      %888 = sbr.rel (0) target = $region65
    $region64: #{_fwd.1} parent=1 // pred_region
      %s890 = ssub.s32 128, 128
      %891 = vsyncadd [#allocation15], %s890
      %s893 = sshll.u32 [#allocation14], 4
      %s894 = int_to_ptr.vmem [resolvable:$true] %s893
      %896 = dma.vmem_to_hbm [thread:$0]  %s894, 128, %s9, [#allocation15]
    $region65: #{_fwd.1} parent=1 // pred_fallthru
      _
    // Predicated region
    $region66: #{_fwd.1} parent=1 // pred_check
      _
    $region67: #{_fwd.1} parent=1 // pred_check_branch
      %898 = sbr.rel (0) target = $region69
    $region68: #{_fwd.1} parent=1 // pred_region
      %s900 = ssub.s32 128, 128
      %901 = vsyncadd [#allocation15], %s900
      %s903 = sshll.u32 [#allocation16], 4
      %s904 = int_to_ptr.vmem [resolvable:$true] %s903
      %906 = dma.vmem_to_hbm [thread:$0]  %s904, 128, %s10, [#allocation15]
    $region69: #{_fwd.1} parent=1 // pred_fallthru
      _
    // Predicated region
    $region70: #{_fwd.1} parent=1 // pred_check
      _
    $region71: #{_fwd.1} parent=1 // pred_check_branch
      %908 = sbr.rel (0) target = $region73
    $region72: #{_fwd.1} parent=1 // pred_region
      %909 = dma.done [#allocation4], 128
    $region73: #{_fwd.1} parent=1 // pred_fallthru
      _
    // Predicated region
    $region74: #{_fwd.1} parent=1 // pred_check
      _
    $region75: #{_fwd.1} parent=1 // pred_check_branch
      %911 = sbr.rel (0) target = $region77
    $region76: #{_fwd.1} parent=1 // pred_region
      %912 = dma.done [#allocation15], 128
    $region77: #{_fwd.1} parent=1 // pred_fallthru
      _
    // Predicated region
    $region78: #{_fwd.1} parent=1 // pred_check
      _
    $region79: #{_fwd.1} parent=1 // pred_check_branch
      %914 = sbr.rel (0) target = $region81
    $region80: #{_fwd.1} parent=1 // pred_region
      %915 = dma.done [#allocation15], 128
    $region81: #{_fwd.1} parent=1 // pred_fallthru
      _
    %916 = vsyncpa [#allocation3], 1
    %917 = vsyncpa [#allocation6], 1
    %918 = vsyncpa [#allocation9], 1
    %919 = vsyncpa [#allocation12], 1
    %920 = vsyncpa [#allocation4], 1
    %921 = vsyncpa [#allocation15], 1

// kernel: _fwd.1
$region0: #{_fwd.1}
  #allocation0 [shape = 'u32[]', space=smem, size = 0x4, offset = 0x4, fixed_abs, tag = 'smem constant byte address 0x4 - core index']
  #allocation1 [shape = 'u32[144,128]{1,0:T(1,128)}', space=vmem, size = 0x12000, scoped, tag = 'internal scratch']
  %s0 = inlined_call_operand.vmem [shape: f32[8,384], index: 0, kind: input, shape index: {}]
  %s1 = inlined_call_operand.hbm [shape: f32[256,128], index: 1, kind: input, shape index: {}]
  %s2 = inlined_call_operand.hbm [shape: f32[128,128], index: 2, kind: input, shape index: {}]
  %s3 = inlined_call_operand.hbm [shape: f32[128,256], index: 3, kind: input, shape index: {}]
  %s4 = inlined_call_operand.hbm [shape: f32[256,128], index: 4, kind: input, shape index: {}]
  %s5 = inlined_call_operand.hbm [shape: f32[128,128], index: 5, kind: input, shape index: {}]
  %s6 = inlined_call_operand.hbm [shape: f32[128,128], index: 6, kind: input, shape index: {}]
  %s7 = inlined_call_operand.vmem [shape: f32[16,256], index: 7, kind: input, shape index: {}]
  %s8 = inlined_call_operand.hbm [shape: f32[8,128], index: 8, kind: output, shape index: {0}]
  %s9 = inlined_call_operand.hbm [shape: f32[8,128], index: 9, kind: output, shape index: {1}]
  %s10 = inlined_call_operand.hbm [shape: f32[8,128], index: 10, kind: output, shape index: {2}]
  %11 = xla_tuple %s8, %s9, %s10
  %s12 = sld [smem:[#allocation0]]
  $region82: #{_fwd.1} parent=0
    _
  %s14 = ssub.s32 1, %s12
  %s15 = scalar_select 0, %s14, %s12
  $region1: #{_fwd.1} parent=0
    #allocation2 [shape = 'u8[131072]{0}', space=vmem, size = 0x20000, scoped, tag = 'input window, operand 1, single buffered']
    #allocation3 [shape = 's32[1]{0}', space=sflag, size = 0x4, scoped, tag = 'scoped memory for _fwd.1']
    #allocation4 [shape = 's32[1]{0}', space=sflag, size = 0x4, scoped, tag = 'scoped memory for _fwd.1']
    #allocation5 [shape = 'u8[65536]{0}', space=vmem, size = 0x10000, scoped, tag = 'input window, operand 2, single buffered']
    #allocation6 [shape = 's32[1]{0}', space=sflag, size = 0x4, scoped, tag = 'scoped memory for _fwd.1']
    #allocation7 [shape = 'u8[131072]{0}', space=vmem, size = 0x20000, scoped, tag = 'input window, operand 3, single buffered']
    #allocation8 [shape = 'u8[131072]{0}', space=vmem, size = 0x20000, scoped, tag = 'input window, operand 4, single buffered']
    #allocation9 [shape = 's32[1]{0}', space=sflag, size = 0x4, scoped, tag = 'scoped memory for _fwd.1']
    #allocation10 [shape = 'u8[65536]{0}', space=vmem, size = 0x10000, scoped, tag = 'input window, operand 5, single buffered']
    #allocation11 [shape = 'u8[65536]{0}', space=vmem, size = 0x10000, scoped, tag = 'input window, operand 6, single buffered']
    #allocation12 [shape = 's32[1]{0}', space=sflag, size = 0x4, scoped, tag = 'scoped memory for _fwd.1']
    #allocation13 [shape = 'u8[4096]{0}', space=vmem, size = 0x1000, scoped, tag = 'output window, operand 0, single buffered']
    #allocation14 [shape = 'u8[4096]{0}', space=vmem, size = 0x1000, scoped, tag = 'output window, operand 1, single buffered']
    #allocation15 [shape = 's32[1]{0}', space=sflag, size = 0x4, scoped, tag = 'scoped memory for _fwd.1']
    #allocation16 [shape = 'u8[4096]{0}', space=vmem, size = 0x1000, scoped, tag = 'output window, operand 2, single buffered']
    %16 = vsyncpa [#allocation3], 0
    %17 = vsyncpa [#allocation6], 0
    %18 = vsyncpa [#allocation9], 0
    %19 = vsyncpa [#allocation12], 0
    %20 = vsyncpa [#allocation4], 0
    %21 = vsyncpa [#allocation15], 0
    // Predicated region
    $region2: #{_fwd.1} parent=1 // pred_check
      _
    $region3: #{_fwd.1} parent=1 // pred_check_branch
      %23 = sbr.rel (0) target = $region5
    $region4: #{_fwd.1} parent=1 // pred_region
      _
    $region5: #{_fwd.1} parent=1 // pred_fallthru
      _
    // Predicated region
    $region6: #{_fwd.1} parent=1 // pred_check
      _
    $region7: #{_fwd.1} parent=1 // pred_check_branch
      %25 = sbr.rel (0) target = $region9
    $region8: #{_fwd.1} parent=1 // pred_region
      %s27 = ssub.s32 4096, 4096
      %28 = vsyncadd [#allocation3], %s27
      %s29 = sshll.u32 [#allocation2], 4
      %s30 = int_to_ptr.vmem [resolvable:$true] %s29
      %35 = dma.hbm_to_vmem [thread:$0]  %s1, 4096, %s30, [#allocation3], 128, 128, 8
    $region9: #{_fwd.1} parent=1 // pred_fallthru
      _
    // Predicated region
    $region10: #{_fwd.1} parent=1 // pred_check
      _
    $region11: #{_fwd.1} parent=1 // pred_check_branch
      %37 = sbr.rel (0) target = $region13
    $region12: #{_fwd.1} parent=1 // pred_region
      %s39 = ssub.s32 2048, 2048
      %40 = vsyncadd [#allocation6], %s39
      %s41 = sshll.u32 [#allocation5], 4
      %s42 = int_to_ptr.vmem [resolvable:$true] %s41
      %47 = dma.hbm_to_vmem [thread:$0]  %s2, 2048, %s42, [#allocation6], 128, 128, 8
    $region13: #{_fwd.1} parent=1 // pred_fallthru
      _
    // Predicated region
    $region14: #{_fwd.1} parent=1 // pred_check
      _
    $region15: #{_fwd.1} parent=1 // pred_check_branch
      %49 = sbr.rel (0) target = $region17
    $region16: #{_fwd.1} parent=1 // pred_region
      %s51 = ssub.s32 4096, 4096
      %52 = vsyncadd [#allocation6], %s51
      %s53 = sshll.u32 [#allocation7], 4
      %s54 = int_to_ptr.vmem [resolvable:$true] %s53
      %59 = dma.hbm_to_vmem [thread:$0]  %s3, 4096, %s54, [#allocation6], 256, 256, 16
    $region17: #{_fwd.1} parent=1 // pred_fallthru
      _
    // Predicated region
    $region18: #{_fwd.1} parent=1 // pred_check
      _
    $region19: #{_fwd.1} parent=1 // pred_check_branch
      %61 = sbr.rel (0) target = $region21
    $region20: #{_fwd.1} parent=1 // pred_region
      %s63 = ssub.s32 4096, 4096
      %64 = vsyncadd [#allocation9], %s63
      %s65 = sshll.u32 [#allocation8], 4
      %s66 = int_to_ptr.vmem [resolvable:$true] %s65
      %71 = dma.hbm_to_vmem [thread:$0]  %s4, 4096, %s66, [#allocation9], 128, 128, 8
    $region21: #{_fwd.1} parent=1 // pred_fallthru
      _
    // Predicated region
    $region22: #{_fwd.1} parent=1 // pred_check
      _
    $region23: #{_fwd.1} parent=1 // pred_check_branch
      %73 = sbr.rel (0) target = $region25
    $region24: #{_fwd.1} parent=1 // pred_region
      %s75 = ssub.s32 2048, 2048
      %76 = vsyncadd [#allocation9], %s75
      %s77 = sshll.u32 [#allocation10], 4
      %s78 = int_to_ptr.vmem [resolvable:$true] %s77
      %83 = dma.hbm_to_vmem [thread:$0]  %s5, 2048, %s78, [#allocation9], 128, 128, 8
    $region25: #{_fwd.1} parent=1 // pred_fallthru
      _
    // Predicated region
    $region26: #{_fwd.1} parent=1 // pred_check
      _
    $region27: #{_fwd.1} parent=1 // pred_check_branch
      %85 = sbr.rel (0) target = $region29
    $region28: #{_fwd.1} parent=1 // pred_region
      %s87 = ssub.s32 2048, 2048
      %88 = vsyncadd [#allocation12], %s87
      %s89 = sshll.u32 [#allocation11], 4
      %s90 = int_to_ptr.vmem [resolvable:$true] %s89
      %95 = dma.hbm_to_vmem [thread:$0]  %s6, 2048, %s90, [#allocation12], 128, 128, 8
    $region29: #{_fwd.1} parent=1 // pred_fallthru
      _
    // Predicated region
    $region30: #{_fwd.1} parent=1 // pred_check
      _
    $region31: #{_fwd.1} parent=1 // pred_check_branch
      %97 = sbr.rel (0) target = $region33
    $region32: #{_fwd.1} parent=1 // pred_region
      _
    $region33: #{_fwd.1} parent=1 // pred_fallthru
      _
    // Predicated region
    $region34: #{_fwd.1} parent=1 // pred_check
      _
    $region35: #{_fwd.1} parent=1 // pred_check_branch
      %99 = sbr.rel (0) target = $region37
    $region36: #{_fwd.1} parent=1 // pred_region
      %100 = dma.done [#allocation3], 4096
    $region37: #{_fwd.1} parent=1 // pred_fallthru
      _
    // Predicated region
    $region38: #{_fwd.1} parent=1 // pred_check
      _
    $region39: #{_fwd.1} parent=1 // pred_check_branch
      %102 = sbr.rel (0) target = $region41
    $region40: #{_fwd.1} parent=1 // pred_region
      %103 = dma.done [#allocation6], 2048
    $region41: #{_fwd.1} parent=1 // pred_fallthru
      _
    // Predicated region
    $region42: #{_fwd.1} parent=1 // pred_check
      _
    $region43: #{_fwd.1} parent=1 // pred_check_branch
      %105 = sbr.rel (0) target = $region45
    $region44: #{_fwd.1} parent=1 // pred_region
      %106 = dma.done [#allocation6], 4096
    $region45: #{_fwd.1} parent=1 // pred_fallthru
      _
    // Predicated region
    $region46: #{_fwd.1} parent=1 // pred_check
      _
    $region47: #{_fwd.1} parent=1 // pred_check_branch
      %108 = sbr.rel (0) target = $region49
    $region48: #{_fwd.1} parent=1 // pred_region
      %109 = dma.done [#allocation9], 4096
    $region49: #{_fwd.1} parent=1 // pred_fallthru
      _
    // Predicated region
    $region50: #{_fwd.1} parent=1 // pred_check
      _
    $region51: #{_fwd.1} parent=1 // pred_check_branch
      %111 = sbr.rel (0) target = $region53
    $region52: #{_fwd.1} parent=1 // pred_region
      %112 = dma.done [#allocation9], 2048
    $region53: #{_fwd.1} parent=1 // pred_fallthru
      _
    // Predicated region
    $region54: #{_fwd.1} parent=1 // pred_check
      _
    $region55: #{_fwd.1} parent=1 // pred_check_branch
      %114 = sbr.rel (0) target = $region57
    $region56: #{_fwd.1} parent=1 // pred_region
      %115 = dma.done [#allocation12], 2048
    $region57: #{_fwd.1} parent=1 // pred_fallthru
      _
    %v116 = vld [vmem:[%s0] sm:$0xff]
    %v117 = vld [vmem:[%s0 + $0x8] sm:$0xff]
    %v118 = vld [vmem:[%s0 + $0x10] sm:$0xff]
    %v119 = vld [vmem:[#allocation2] sm:$0xff]
    %v120 = vld [vmem:[#allocation2 + $0x8] sm:$0xff]
    %v121 = vld [vmem:[#allocation2 + $0x10] sm:$0xff]
    %v122 = vld [vmem:[#allocation2 + $0x18] sm:$0xff]
    %v123 = vld [vmem:[#allocation2 + $0x20] sm:$0xff]
    %v124 = vld [vmem:[#allocation2 + $0x28] sm:$0xff]
    %v125 = vld [vmem:[#allocation2 + $0x30] sm:$0xff]
    %v126 = vld [vmem:[#allocation2 + $0x38] sm:$0xff]
    %v127 = vld [vmem:[#allocation2 + $0x40] sm:$0xff]
    %v128 = vld [vmem:[#allocation2 + $0x48] sm:$0xff]
    %v129 = vld [vmem:[#allocation2 + $0x50] sm:$0xff]
    %v130 = vld [vmem:[#allocation2 + $0x58] sm:$0xff]
    %v131 = vld [vmem:[#allocation2 + $0x60] sm:$0xff]
    %v132 = vld [vmem:[#allocation2 + $0x68] sm:$0xff]
    %v133 = vld [vmem:[#allocation2 + $0x70] sm:$0xff]
    %v134 = vld [vmem:[#allocation2 + $0x78] sm:$0xff]
    %v135 = vld [vmem:[#allocation2 + $0x80] sm:$0xff]
    %v136 = vld [vmem:[#allocation2 + $0x88] sm:$0xff]
    %v137 = vld [vmem:[#allocation2 + $0x90] sm:$0xff]
    %v138 = vld [vmem:[#allocation2 + $0x98] sm:$0xff]
    %v139 = vld [vmem:[#allocation2 + $0xa0] sm:$0xff]
    %v140 = vld [vmem:[#allocation2 + $0xa8] sm:$0xff]
    %v141 = vld [vmem:[#allocation2 + $0xb0] sm:$0xff]
    %v142 = vld [vmem:[#allocation2 + $0xb8] sm:$0xff]
    %v143 = vld [vmem:[#allocation2 + $0xc0] sm:$0xff]
    %v144 = vld [vmem:[#allocation2 + $0xc8] sm:$0xff]
    %v145 = vld [vmem:[#allocation2 + $0xd0] sm:$0xff]
    %v146 = vld [vmem:[#allocation2 + $0xd8] sm:$0xff]
    %v147 = vld [vmem:[#allocation2 + $0xe0] sm:$0xff]
    %v148 = vld [vmem:[#allocation2 + $0xe8] sm:$0xff]
    %v149 = vld [vmem:[#allocation2 + $0xf0] sm:$0xff]
    %v150 = vld [vmem:[#allocation2 + $0xf8] sm:$0xff]
    %v151 = vld [vmem:[%s7] ss:$0 sm:$0xff]
    %152 = vmatprep.subr.mxu0 0.0
    %153 = vmatpush1.msra.mxu0 %v119
    %154 = vmatprep.subr.mxu0 0.0
    %155 = vmatpush1.msra.mxu0 %v120
    %156 = vmatprep.subr.mxu0 0.0
    %157 = vmatpush1.msra.mxu0 %v121
    %158 = vmatprep.subr.mxu0 0.0
    %159 = vmatpush1.msra.mxu0 %v122
    %160 = vmatprep.subr.mxu0 0.0
    %161 = vmatpush1.msra.mxu0 %v123
    %162 = vmatprep.subr.mxu0 0.0
    %163 = vmatpush1.msra.mxu0 %v124
    %164 = vmatprep.subr.mxu0 0.0
    %165 = vmatpush1.msra.mxu0 %v125
    %166 = vmatprep.subr.mxu0 0.0
    %167 = vmatpush1.msra.mxu0 %v126
    %168 = vmatprep.subr.mxu0 0.0
    %169 = vmatpush1.msra.mxu0 %v127
    %170 = vmatprep.subr.mxu0 0.0
    %171 = vmatpush1.msra.mxu0 %v128
    %172 = vmatprep.subr.mxu0 0.0
    %173 = vmatpush1.msra.mxu0 %v129
    %174 = vmatprep.subr.mxu0 0.0
    %175 = vmatpush1.msra.mxu0 %v130
    %176 = vmatprep.subr.mxu0 0.0
    %177 = vmatpush1.msra.mxu0 %v131
    %178 = vmatprep.subr.mxu0 0.0
    %179 = vmatpush1.msra.mxu0 %v132
    %180 = vmatprep.subr.mxu0 0.0
    %181 = vmatpush1.msra.mxu0 %v133
    %182 = vmatprep.subr.mxu0 0.0
    %183 = vmatpush1.msra.mxu0 %v134
    %184 = vmatprep.subr.mxu0 0.0
    %185 = vmatpush1.msra.mxu0 %v135
    %186 = vmatprep.subr.mxu0 0.0
    %187 = vmatpush1.msra.mxu0 %v136
    %188 = vmatprep.subr.mxu0 0.0
    %189 = vmatpush1.msra.mxu0 %v137
    %190 = vmatprep.subr.mxu0 0.0
    %191 = vmatpush1.msra.mxu0 %v138
    %192 = vmatprep.subr.mxu0 0.0
    %193 = vmatpush1.msra.mxu0 %v139
    %194 = vmatprep.subr.mxu0 0.0
    %195 = vmatpush1.msra.mxu0 %v140
    %196 = vmatprep.subr.mxu0 0.0
    %197 = vmatpush1.msra.mxu0 %v141
    %198 = vmatprep.subr.mxu0 0.0
    %199 = vmatpush1.msra.mxu0 %v142
    %200 = vmatprep.subr.mxu0 0.0
    %201 = vmatpush1.msra.mxu0 %v143
    %202 = vmatprep.subr.mxu0 0.0
    %203 = vmatpush1.msra.mxu0 %v144
    %204 = vmatprep.subr.mxu0 0.0
    %205 = vmatpush1.msra.mxu0 %v145
    %206 = vmatprep.subr.mxu0 0.0
    %207 = vmatpush1.msra.mxu0 %v146
    %208 = vmatprep.subr.mxu0 0.0
    %209 = vmatpush1.msra.mxu0 %v147
    %210 = vmatprep.subr.mxu0 0.0
    %211 = vmatpush1.msra.mxu0 %v148
    %212 = vmatprep.subr.mxu0 0.0
    %213 = vmatpush1.msra.mxu0 %v149
    %214 = vmatprep.subr.mxu0 0.0
    %215 = vmatpush1.msra.mxu0 %v150
    %216 = vmatprep.mubr.f32.mxu0 %v117
    %217 = vmatmul.mubr.f32.gmra.mrb[0].mxu0 %v116
    %v218 = vpop.f32.mrb[0].mxu0
    %v219 = vadd.f32 %v151, %v218
    %v220 = vpop.f32.mrb[0].mxu0
    %221 = vdwg.mxu0
    %v222 = vld [vmem:[%s7 + $0x1] ss:$0 sm:$0xff]
    %v223 = vld [vmem:[%s7 + $0x2] ss:$0 sm:$0xff]
    %224 = vadd.xlane.f32.xlu0 %v219
    %v225 = vpop.xlane.xlu0 %224
    %v226 = vmul.f32 %v225, 0.03125
    %v227 = vsub.f32 %v219, %v226
    %v228 = vmul.f32 %v227, %v227
    %229 = vadd.xlane.f32.xlu0 %v228
    %v230 = vpop.xlane.xlu0 %229
    %v231 = vmul.f32 %v226, %v226
    %v232 = vmul.f32 %v231, 96.0
    %v233 = vsub.f32 %v230, %v232
    %v234 = vmul.f32 %v233, 0.03125
    %v235 = vadd.f32 %v234, 1e-05
    %v236 = vrsqrt.pop %v235
    %v237 = vmul.f32 %v227, %v236
    %v238 = vmul.f32 %v237, %v222
    %v239 = vadd.f32 %v238, %v223
    %vm240 = vcmp.gt.f32.partialorder %v239, 0.0
    %v241 = vmin.f32 %v239, 0.0
    %v242 = vmul.f32 %v241, 1.442695
    %v243 = vpow.pop %v242
    %v244 = vsub.f32 %v243, 1.0
    %v245 = vsel %vm240, %v239, %v244
    %v246 = vld [vmem:[#allocation5] sm:$0xff]
    %v247 = vld [vmem:[#allocation5 + $0x8] sm:$0xff]
    %v248 = vld [vmem:[#allocation5 + $0x10] sm:$0xff]
    %v249 = vld [vmem:[#allocation5 + $0x18] sm:$0xff]
    %v250 = vld [vmem:[#allocation5 + $0x20] sm:$0xff]
    %v251 = vld [vmem:[#allocation5 + $0x28] sm:$0xff]
    %v252 = vld [vmem:[#allocation5 + $0x30] sm:$0xff]
    %v253 = vld [vmem:[#allocation5 + $0x38] sm:$0xff]
    %v254 = vld [vmem:[#allocation5 + $0x40] sm:$0xff]
    %v255 = vld [vmem:[#allocation5 + $0x48] sm:$0xff]
    %v256 = vld [vmem:[#allocation5 + $0x50] sm:$0xff]
    %v257 = vld [vmem:[#allocation5 + $0x58] sm:$0xff]
    %v258 = vld [vmem:[#allocation5 + $0x60] sm:$0xff]
    %v259 = vld [vmem:[#allocation5 + $0x68] sm:$0xff]
    %v260 = vld [vmem:[#allocation5 + $0x70] sm:$0xff]
    %v261 = vld [vmem:[#allocation5 + $0x78] sm:$0xff]
    %v262 = vld [vmem:[%s7 + $0x3] ss:$0 sm:$0xff]
    %263 = vmatprep.subr.mxu0 0.0
    %264 = vmatpush1.msra.mxu0 %v246
    %265 = vmatprep.subr.mxu0 0.0
    %266 = vmatpush1.msra.mxu0 %v247
    %267 = vmatprep.subr.mxu0 0.0
    %268 = vmatpush1.msra.mxu0 %v248
    %269 = vmatprep.subr.mxu0 0.0
    %270 = vmatpush1.msra.mxu0 %v249
    %271 = vmatprep.subr.mxu0 0.0
    %272 = vmatpush1.msra.mxu0 %v250
    %273 = vmatprep.subr.mxu0 0.0
    %274 = vmatpush1.msra.mxu0 %v251
    %275 = vmatprep.subr.mxu0 0.0
    %276 = vmatpush1.msra.mxu0 %v252
    %277 = vmatprep.subr.mxu0 0.0
    %278 = vmatpush1.msra.mxu0 %v253
    %279 = vmatprep.subr.mxu0 0.0
    %280 = vmatpush1.msra.mxu0 %v254
    %281 = vmatprep.subr.mxu0 0.0
    %282 = vmatpush1.msra.mxu0 %v255
    %283 = vmatprep.subr.mxu0 0.0
    %284 = vmatpush1.msra.mxu0 %v256
    %285 = vmatprep.subr.mxu0 0.0
    %286 = vmatpush1.msra.mxu0 %v257
    %287 = vmatprep.subr.mxu0 0.0
    %288 = vmatpush1.msra.mxu0 %v258
    %289 = vmatprep.subr.mxu0 0.0
    %290 = vmatpush1.msra.mxu0 %v259
    %291 = vmatprep.subr.mxu0 0.0
    %292 = vmatpush1.msra.mxu0 %v260
    %293 = vmatprep.subr.mxu0 0.0
    %294 = vmatpush1.msra.mxu0 %v261
    %295 = vmatprep.subr.mxu0 0.0
    %296 = vmatpush1.msra.mxu0 0.0
    %297 = vmatprep.subr.mxu0 0.0
    %298 = vmatpush1.msra.mxu0 0.0
    %299 = vmatprep.subr.mxu0 0.0
    %300 = vmatpush1.msra.mxu0 0.0
    %301 = vmatprep.subr.mxu0 0.0
    %302 = vmatpush1.msra.mxu0 0.0
    %303 = vmatprep.subr.mxu0 0.0
    %304 = vmatpush1.msra.mxu0 0.0
    %305 = vmatprep.subr.mxu0 0.0
    %306 = vmatpush1.msra.mxu0 0.0
    %307 = vmatprep.subr.mxu0 0.0
    %308 = vmatpush1.msra.mxu0 0.0
    %309 = vmatprep.subr.mxu0 0.0
    %310 = vmatpush1.msra.mxu0 0.0
    %311 = vmatprep.subr.mxu0 0.0
    %312 = vmatpush1.msra.mxu0 0.0
    %313 = vmatprep.subr.mxu0 0.0
    %314 = vmatpush1.msra.mxu0 0.0
    %315 = vmatprep.subr.mxu0 0.0
    %316 = vmatpush1.msra.mxu0 0.0
    %317 = vmatprep.subr.mxu0 0.0
    %318 = vmatpush1.msra.mxu0 0.0
    %319 = vmatprep.subr.mxu0 0.0
    %320 = vmatpush1.msra.mxu0 0.0
    %321 = vmatprep.subr.mxu0 0.0
    %322 = vmatpush1.msra.mxu0 0.0
    %323 = vmatprep.subr.mxu0 0.0
    %324 = vmatpush1.msra.mxu0 0.0
    %325 = vmatprep.subr.mxu0 0.0
    %326 = vmatpush1.msra.mxu0 0.0
    %327 = vmatprep.mubr.f32.mxu0 0.0
    %328 = vmatmul.mubr.f32.gmra.mrb[0].mxu0 %v245
    %v329 = vpop.f32.mrb[0].mxu0
    %v330 = vadd.f32 %v262, %v329
    %v331 = vpop.f32.mrb[0].mxu0
    %332 = vdwg.mxu0
    %v333 = vld [vmem:[%s7 + $0x4] ss:$0 sm:$0xff]
    %v334 = vld [vmem:[%s7 + $0x5] ss:$0 sm:$0xff]
    %335 = vadd.xlane.f32.xlu0 %v330
    %v336 = vpop.xlane.xlu0 %335
    %v337 = vmul.f32 %v336, 0.0625
    %v338 = vsub.f32 %v330, %v337
    %v339 = vmul.f32 %v338, %v338
    %340 = vadd.xlane.f32.xlu0 %v339
    %v341 = vpop.xlane.xlu0 %340
    %v342 = vmul.f32 %v337, %v337
    %v343 = vmul.f32 %v342, 112.0
    %v344 = vsub.f32 %v341, %v343
    %v345 = vmul.f32 %v344, 0.0625
    %v346 = vadd.f32 %v345, 1e-05
    %v347 = vrsqrt.pop %v346
    %v348 = vmul.f32 %v338, %v347
    %v349 = vmul.f32 %v348, %v333
    %v350 = vadd.f32 %v349, %v334
    %vm351 = vcmp.gt.f32.partialorder %v350, 0.0
    %v352 = vmin.f32 %v350, 0.0
    %v353 = vmul.f32 %v352, 1.442695
    %v354 = vpow.pop %v353
    %v355 = vsub.f32 %v354, 1.0
    %v356 = vsel %vm351, %v350, %v355
    %v357 = vld [vmem:[#allocation7] sm:$0xff]
    %v358 = vld [vmem:[#allocation7 + $0x8] sm:$0xff]
    %v359 = vld [vmem:[#allocation7 + $0x10] sm:$0xff]
    %v360 = vld [vmem:[#allocation7 + $0x18] sm:$0xff]
    %v361 = vld [vmem:[#allocation7 + $0x20] sm:$0xff]
    %v362 = vld [vmem:[#allocation7 + $0x28] sm:$0xff]
    %v363 = vld [vmem:[#allocation7 + $0x30] sm:$0xff]
    %v364 = vld [vmem:[#allocation7 + $0x38] sm:$0xff]
    %v365 = vld [vmem:[#allocation7 + $0x40] sm:$0xff]
    %v366 = vld [vmem:[#allocation7 + $0x48] sm:$0xff]
    %v367 = vld [vmem:[#allocation7 + $0x50] sm:$0xff]
    %v368 = vld [vmem:[#allocation7 + $0x58] sm:$0xff]
    %v369 = vld [vmem:[#allocation7 + $0x60] sm:$0xff]
    %v370 = vld [vmem:[#allocation7 + $0x68] sm:$0xff]
    %v371 = vld [vmem:[#allocation7 + $0x70] sm:$0xff]
    %v372 = vld [vmem:[#allocation7 + $0x78] sm:$0xff]
    %v373 = vld [vmem:[#allocation7 + $0x80] sm:$0xff]
    %v374 = vld [vmem:[#allocation7 + $0x88] sm:$0xff]
    %v375 = vld [vmem:[#allocation7 + $0x90] sm:$0xff]
    %v376 = vld [vmem:[#allocation7 + $0x98] sm:$0xff]
    %v377 = vld [vmem:[#allocation7 + $0xa0] sm:$0xff]
    %v378 = vld [vmem:[#allocation7 + $0xa8] sm:$0xff]
    %v379 = vld [vmem:[#allocation7 + $0xb0] sm:$0xff]
    %v380 = vld [vmem:[#allocation7 + $0xb8] sm:$0xff]
    %v381 = vld [vmem:[#allocation7 + $0xc0] sm:$0xff]
    %v382 = vld [vmem:[#allocation7 + $0xc8] sm:$0xff]
    %v383 = vld [vmem:[#allocation7 + $0xd0] sm:$0xff]
    %v384 = vld [vmem:[#allocation7 + $0xd8] sm:$0xff]
    %v385 = vld [vmem:[#allocation7 + $0xe0] sm:$0xff]
    %v386 = vld [vmem:[#allocation7 + $0xe8] sm:$0xff]
    %v387 = vld [vmem:[#allocation7 + $0xf0] sm:$0xff]
    %v388 = vld [vmem:[#allocation7 + $0xf8] sm:$0xff]
    %s389 = scalar_lea.vmem %s7, 6
    %v390 = vld [vmem:[%s389] ss:$8 sm:$0x3]
    %v392 = vlaneseq
    %v393 = vshrl.u32 %v392, 7
    %v394 = vsub.s32 0, %v393
    %v395 = vrot.slane %v390, %v394
    %v396 = vlaneseq
    %v397 = vshrl.u32 %v396, 7
    %v398 = vsub.s32 1, %v397
    %v399 = vrot.slane %v390, %v398
    %402 = vmatprep.subr.mxu0 %v358
    %403 = vmatpush1.msra.mxu0 %v357
    %404 = vmatprep.subr.mxu0 %v360
    %405 = vmatpush1.msra.mxu0 %v359
    %406 = vmatprep.subr.mxu0 %v362
    %407 = vmatpush1.msra.mxu0 %v361
    %408 = vmatprep.subr.mxu0 %v364
    %409 = vmatpush1.msra.mxu0 %v363
    %410 = vmatprep.subr.mxu0 %v366
    %411 = vmatpush1.msra.mxu0 %v365
    %412 = vmatprep.subr.mxu0 %v368
    %413 = vmatpush1.msra.mxu0 %v367
    %414 = vmatprep.subr.mxu0 %v370
    %415 = vmatpush1.msra.mxu0 %v369
    %416 = vmatprep.subr.mxu0 %v372
    %417 = vmatpush1.msra.mxu0 %v371
    %418 = vmatprep.subr.mxu0 %v374
    %419 = vmatpush1.msra.mxu0 %v373
    %420 = vmatprep.subr.mxu0 %v376
    %421 = vmatpush1.msra.mxu0 %v375
    %422 = vmatprep.subr.mxu0 %v378
    %423 = vmatpush1.msra.mxu0 %v377
    %424 = vmatprep.subr.mxu0 %v380
    %425 = vmatpush1.msra.mxu0 %v379
    %426 = vmatprep.subr.mxu0 %v382
    %427 = vmatpush1.msra.mxu0 %v381
    %428 = vmatprep.subr.mxu0 %v384
    %429 = vmatpush1.msra.mxu0 %v383
    %430 = vmatprep.subr.mxu0 %v386
    %431 = vmatpush1.msra.mxu0 %v385
    %432 = vmatprep.subr.mxu0 %v388
    %433 = vmatpush1.msra.mxu0 %v387
    %434 = vmatprep.subr.mxu0 0.0
    %435 = vmatpush1.msra.mxu0 0.0
    %436 = vmatprep.subr.mxu0 0.0
    %437 = vmatpush1.msra.mxu0 0.0
    %438 = vmatprep.subr.mxu0 0.0
    %439 = vmatpush1.msra.mxu0 0.0
    %440 = vmatprep.subr.mxu0 0.0
    %441 = vmatpush1.msra.mxu0 0.0
    %442 = vmatprep.subr.mxu0 0.0
    %443 = vmatpush1.msra.mxu0 0.0
    %444 = vmatprep.subr.mxu0 0.0
    %445 = vmatpush1.msra.mxu0 0.0
    %446 = vmatprep.subr.mxu0 0.0
    %447 = vmatpush1.msra.mxu0 0.0
    %448 = vmatprep.subr.mxu0 0.0
    %449 = vmatpush1.msra.mxu0 0.0
    %450 = vmatprep.subr.mxu0 0.0
    %451 = vmatpush1.msra.mxu0 0.0
    %452 = vmatprep.subr.mxu0 0.0
    %453 = vmatpush1.msra.mxu0 0.0
    %454 = vmatprep.subr.mxu0 0.0
    %455 = vmatpush1.msra.mxu0 0.0
    %456 = vmatprep.subr.mxu0 0.0
    %457 = vmatpush1.msra.mxu0 0.0
    %458 = vmatprep.subr.mxu0 0.0
    %459 = vmatpush1.msra.mxu0 0.0
    %460 = vmatprep.subr.mxu0 0.0
    %461 = vmatpush1.msra.mxu0 0.0
    %462 = vmatprep.subr.mxu0 0.0
    %463 = vmatpush1.msra.mxu0 0.0
    %464 = vmatprep.subr.mxu0 0.0
    %465 = vmatpush1.msra.mxu0 0.0
    %466 = vmatprep.mubr.f32.mxu0 0.0
    %467 = vmatmul.mubr.f32.gmra.mrb[0].mxu0 %v356
    %v468 = vpop.f32.mrb[0].mxu0
    %v469 = vadd.f32 %v395, %v468
    %v470 = vpop.f32.mrb[0].mxu0
    %v471 = vadd.f32 %v399, %v470
    %472 = vdwg.mxu0
    %v473 = vmul.f32 %v471, 0.5
    %v474 = vmul.f32 %v473, 1.442695
    %v475 = vpow.pop %v474
    %v476 = vmul.f32 %v118, %v475
    %v477 = vadd.f32 %v469, %v476
    %v478 = vld [vmem:[#allocation8] sm:$0xff]
    %v479 = vld [vmem:[#allocation8 + $0x8] sm:$0xff]
    %v480 = vld [vmem:[#allocation8 + $0x10] sm:$0xff]
    %v481 = vld [vmem:[#allocation8 + $0x18] sm:$0xff]
    %v482 = vld [vmem:[#allocation8 + $0x20] sm:$0xff]
    %v483 = vld [vmem:[#allocation8 + $0x28] sm:$0xff]
    %v484 = vld [vmem:[#allocation8 + $0x30] sm:$0xff]
    %v485 = vld [vmem:[#allocation8 + $0x38] sm:$0xff]
    %v486 = vld [vmem:[#allocation8 + $0x40] sm:$0xff]
    %v487 = vld [vmem:[#allocation8 + $0x48] sm:$0xff]
    %v488 = vld [vmem:[#allocation8 + $0x50] sm:$0xff]
    %v489 = vld [vmem:[#allocation8 + $0x58] sm:$0xff]
    %v490 = vld [vmem:[#allocation8 + $0x60] sm:$0xff]
    %v491 = vld [vmem:[#allocation8 + $0x68] sm:$0xff]
    %v492 = vld [vmem:[#allocation8 + $0x70] sm:$0xff]
    %v493 = vld [vmem:[#allocation8 + $0x78] sm:$0xff]
    %v494 = vld [vmem:[#allocation8 + $0x80] sm:$0xff]
    %v495 = vld [vmem:[#allocation8 + $0x88] sm:$0xff]
    %v496 = vld [vmem:[#allocation8 + $0x90] sm:$0xff]
    %v497 = vld [vmem:[#allocation8 + $0x98] sm:$0xff]
    %v498 = vld [vmem:[#allocation8 + $0xa0] sm:$0xff]
    %v499 = vld [vmem:[#allocation8 + $0xa8] sm:$0xff]
    %v500 = vld [vmem:[#allocation8 + $0xb0] sm:$0xff]
    %v501 = vld [vmem:[#allocation8 + $0xb8] sm:$0xff]
    %v502 = vld [vmem:[#allocation8 + $0xc0] sm:$0xff]
    %v503 = vld [vmem:[#allocation8 + $0xc8] sm:$0xff]
    %v504 = vld [vmem:[#allocation8 + $0xd0] sm:$0xff]
    %v505 = vld [vmem:[#allocation8 + $0xd8] sm:$0xff]
    %v506 = vld [vmem:[#allocation8 + $0xe0] sm:$0xff]
    %v507 = vld [vmem:[#allocation8 + $0xe8] sm:$0xff]
    %v508 = vld [vmem:[#allocation8 + $0xf0] sm:$0xff]
    %v509 = vld [vmem:[#allocation8 + $0xf8] sm:$0xff]
    %510 = vmatprep.subr.mxu0 0.0
    %511 = vmatpush1.msra.mxu0 %v494
    %512 = vmatprep.subr.mxu0 0.0
    %513 = vmatpush1.msra.mxu0 %v495
    %514 = vmatprep.subr.mxu0 0.0
    %515 = vmatpush1.msra.mxu0 %v496
    %516 = vmatprep.subr.mxu0 0.0
    %517 = vmatpush1.msra.mxu0 %v497
    %518 = vmatprep.subr.mxu0 0.0
    %519 = vmatpush1.msra.mxu0 %v498
    %520 = vmatprep.subr.mxu0 0.0
    %521 = vmatpush1.msra.mxu0 %v499
    %522 = vmatprep.subr.mxu0 0.0
    %523 = vmatpush1.msra.mxu0 %v500
    %524 = vmatprep.subr.mxu0 0.0
    %525 = vmatpush1.msra.mxu0 %v501
    %526 = vmatprep.subr.mxu0 0.0
    %527 = vmatpush1.msra.mxu0 %v502
    %528 = vmatprep.subr.mxu0 0.0
    %529 = vmatpush1.msra.mxu0 %v503
    %530 = vmatprep.subr.mxu0 0.0
    %531 = vmatpush1.msra.mxu0 %v504
    %532 = vmatprep.subr.mxu0 0.0
    %533 = vmatpush1.msra.mxu0 %v505
    %534 = vmatprep.subr.mxu0 0.0
    %535 = vmatpush1.msra.mxu0 %v506
    %536 = vmatprep.subr.mxu0 0.0
    %537 = vmatpush1.msra.mxu0 %v507
    %538 = vmatprep.subr.mxu0 0.0
    %539 = vmatpush1.msra.mxu0 %v508
    %540 = vmatprep.subr.mxu0 0.0
    %541 = vmatpush1.msra.mxu0 %v509
    %542 = vmatprep.subr.mxu0 0.0
    %543 = vmatpush1.msra.mxu0 0.0
    %544 = vmatprep.subr.mxu0 0.0
    %545 = vmatpush1.msra.mxu0 0.0
    %546 = vmatprep.subr.mxu0 0.0
    %547 = vmatpush1.msra.mxu0 0.0
    %548 = vmatprep.subr.mxu0 0.0
    %549 = vmatpush1.msra.mxu0 0.0
    %550 = vmatprep.subr.mxu0 0.0
    %551 = vmatpush1.msra.mxu0 0.0
    %552 = vmatprep.subr.mxu0 0.0
    %553 = vmatpush1.msra.mxu0 0.0
    %554 = vmatprep.subr.mxu0 0.0
    %555 = vmatpush1.msra.mxu0 0.0
    %556 = vmatprep.subr.mxu0 0.0
    %557 = vmatpush1.msra.mxu0 0.0
    %558 = vmatprep.subr.mxu0 0.0
    %559 = vmatpush1.msra.mxu0 0.0
    %560 = vmatprep.subr.mxu0 0.0
    %561 = vmatpush1.msra.mxu0 0.0
    %562 = vmatprep.subr.mxu0 0.0
    %563 = vmatpush1.msra.mxu0 0.0
    %564 = vmatprep.subr.mxu0 0.0
    %565 = vmatpush1.msra.mxu0 0.0
    %566 = vmatprep.subr.mxu0 0.0
    %567 = vmatpush1.msra.mxu0 0.0
    %568 = vmatprep.subr.mxu0 0.0
    %569 = vmatpush1.msra.mxu0 0.0
    %570 = vmatprep.subr.mxu0 0.0
    %571 = vmatpush1.msra.mxu0 0.0
    %572 = vmatprep.subr.mxu0 0.0
    %573 = vmatpush1.msra.mxu0 0.0
    %574 = vmatprep.mubr.f32.mxu0 0.0
    %575 = vmatmul.mubr.f32.gmra.mrb[0].mxu0 %v117
    %v576 = vpop.f32.mrb[0].mxu0
    %v577 = vadd.f32 0.0, %v576
    %v578 = vpop.f32.mrb[0].mxu0
    %579 = vdwg.mxu0
    %580 = vmatprep.subr.mxu0 0.0
    %581 = vmatpush1.msra.mxu0 %v478
    %582 = vmatprep.subr.mxu0 0.0
    %583 = vmatpush1.msra.mxu0 %v479
    %584 = vmatprep.subr.mxu0 0.0
    %585 = vmatpush1.msra.mxu0 %v480
    %586 = vmatprep.subr.mxu0 0.0
    %587 = vmatpush1.msra.mxu0 %v481
    %588 = vmatprep.subr.mxu0 0.0
    %589 = vmatpush1.msra.mxu0 %v482
    %590 = vmatprep.subr.mxu0 0.0
    %591 = vmatpush1.msra.mxu0 %v483
    %592 = vmatprep.subr.mxu0 0.0
    %593 = vmatpush1.msra.mxu0 %v484
    %594 = vmatprep.subr.mxu0 0.0
    %595 = vmatpush1.msra.mxu0 %v485
    %596 = vmatprep.subr.mxu0 0.0
    %597 = vmatpush1.msra.mxu0 %v486
    %598 = vmatprep.subr.mxu0 0.0
    %599 = vmatpush1.msra.mxu0 %v487
    %600 = vmatprep.subr.mxu0 0.0
    %601 = vmatpush1.msra.mxu0 %v488
    %602 = vmatprep.subr.mxu0 0.0
    %603 = vmatpush1.msra.mxu0 %v489
    %604 = vmatprep.subr.mxu0 0.0
    %605 = vmatpush1.msra.mxu0 %v490
    %606 = vmatprep.subr.mxu0 0.0
    %607 = vmatpush1.msra.mxu0 %v491
    %608 = vmatprep.subr.mxu0 0.0
    %609 = vmatpush1.msra.mxu0 %v492
    %610 = vmatprep.subr.mxu0 0.0
    %611 = vmatpush1.msra.mxu0 %v493
    %612 = vmatprep.subr.mxu0 0.0
    %613 = vmatpush1.msra.mxu0 0.0
    %614 = vmatprep.subr.mxu0 0.0
    %615 = vmatpush1.msra.mxu0 0.0
    %616 = vmatprep.subr.mxu0 0.0
    %617 = vmatpush1.msra.mxu0 0.0
    %618 = vmatprep.subr.mxu0 0.0
    %619 = vmatpush1.msra.mxu0 0.0
    %620 = vmatprep.subr.mxu0 0.0
    %621 = vmatpush1.msra.mxu0 0.0
    %622 = vmatprep.subr.mxu0 0.0
    %623 = vmatpush1.msra.mxu0 0.0
    %624 = vmatprep.subr.mxu0 0.0
    %625 = vmatpush1.msra.mxu0 0.0
    %626 = vmatprep.subr.mxu0 0.0
    %627 = vmatpush1.msra.mxu0 0.0
    %628 = vmatprep.subr.mxu0 0.0
    %629 = vmatpush1.msra.mxu0 0.0
    %630 = vmatprep.subr.mxu0 0.0
    %631 = vmatpush1.msra.mxu0 0.0
    %632 = vmatprep.subr.mxu0 0.0
    %633 = vmatpush1.msra.mxu0 0.0
    %634 = vmatprep.subr.mxu0 0.0
    %635 = vmatpush1.msra.mxu0 0.0
    %636 = vmatprep.subr.mxu0 0.0
    %637 = vmatpush1.msra.mxu0 0.0
    %638 = vmatprep.subr.mxu0 0.0
    %639 = vmatpush1.msra.mxu0 0.0
    %640 = vmatprep.subr.mxu0 0.0
    %641 = vmatpush1.msra.mxu0 0.0
    %642 = vmatprep.subr.mxu0 0.0
    %643 = vmatpush1.msra.mxu0 0.0
    %644 = vmatprep.mubr.f32.mxu0 0.0
    %645 = vmatmul.mubr.f32.gmra.mrb[0].mxu0 %v477
    %v646 = vpop.f32.mrb[0].mxu0
    %v647 = vadd.f32 %v577, %v646
    %v648 = vpop.f32.mrb[0].mxu0
    %649 = vdwg.mxu0
    %v650 = vld [vmem:[%s7 + $0x7] ss:$0 sm:$0xff]
    %v651 = vadd.f32 %v647, %v650
    %v652 = vld [vmem:[%s7 + $0x10] ss:$0 sm:$0xff]
    %v653 = vld [vmem:[%s7 + $0x11] ss:$0 sm:$0xff]
    %654 = vadd.xlane.f32.xlu0 %v651
    %v655 = vpop.xlane.xlu0 %654
    %v656 = vmul.f32 %v655, 0.0625
    %v657 = vsub.f32 %v651, %v656
    %v658 = vmul.f32 %v657, %v657
    %659 = vadd.xlane.f32.xlu0 %v658
    %v660 = vpop.xlane.xlu0 %659
    %v661 = vmul.f32 %v656, %v656
    %v662 = vmul.f32 %v661, 112.0
    %v663 = vsub.f32 %v660, %v662
    %v664 = vmul.f32 %v663, 0.0625
    %v665 = vadd.f32 %v664, 1e-05
    %v666 = vrsqrt.pop %v665
    %v667 = vmul.f32 %v657, %v666
    %v668 = vmul.f32 %v667, %v652
    %v669 = vadd.f32 %v668, %v653
    %vm670 = vcmp.gt.f32.partialorder %v669, 0.0
    %v671 = vmin.f32 %v669, 0.0
    %v672 = vmul.f32 %v671, 1.442695
    %v673 = vpow.pop %v672
    %v674 = vsub.f32 %v673, 1.0
    %v675 = vsel %vm670, %v669, %v674
    %v676 = vld [vmem:[#allocation10] sm:$0xff]
    %v677 = vld [vmem:[#allocation10 + $0x8] sm:$0xff]
    %v678 = vld [vmem:[#allocation10 + $0x10] sm:$0xff]
    %v679 = vld [vmem:[#allocation10 + $0x18] sm:$0xff]
    %v680 = vld [vmem:[#allocation10 + $0x20] sm:$0xff]
    %v681 = vld [vmem:[#allocation10 + $0x28] sm:$0xff]
    %v682 = vld [vmem:[#allocation10 + $0x30] sm:$0xff]
    %v683 = vld [vmem:[#allocation10 + $0x38] sm:$0xff]
    %v684 = vld [vmem:[#allocation10 + $0x40] sm:$0xff]
    %v685 = vld [vmem:[#allocation10 + $0x48] sm:$0xff]
    %v686 = vld [vmem:[#allocation10 + $0x50] sm:$0xff]
    %v687 = vld [vmem:[#allocation10 + $0x58] sm:$0xff]
    %v688 = vld [vmem:[#allocation10 + $0x60] sm:$0xff]
    %v689 = vld [vmem:[#allocation10 + $0x68] sm:$0xff]
    %v690 = vld [vmem:[#allocation10 + $0x70] sm:$0xff]
    %v691 = vld [vmem:[#allocation10 + $0x78] sm:$0xff]
    %v692 = vld [vmem:[%s7 + $0x12] ss:$0 sm:$0xff]
    %693 = vmatprep.subr.mxu0 0.0
    %694 = vmatpush1.msra.mxu0 %v676
    %695 = vmatprep.subr.mxu0 0.0
    %696 = vmatpush1.msra.mxu0 %v677
    %697 = vmatprep.subr.mxu0 0.0
    %698 = vmatpush1.msra.mxu0 %v678
    %699 = vmatprep.subr.mxu0 0.0
    %700 = vmatpush1.msra.mxu0 %v679
    %701 = vmatprep.subr.mxu0 0.0
    %702 = vmatpush1.msra.mxu0 %v680
    %703 = vmatprep.subr.mxu0 0.0
    %704 = vmatpush1.msra.mxu0 %v681
    %705 = vmatprep.subr.mxu0 0.0
    %706 = vmatpush1.msra.mxu0 %v682
    %707 = vmatprep.subr.mxu0 0.0
    %708 = vmatpush1.msra.mxu0 %v683
    %709 = vmatprep.subr.mxu0 0.0
    %710 = vmatpush1.msra.mxu0 %v684
    %711 = vmatprep.subr.mxu0 0.0
    %712 = vmatpush1.msra.mxu0 %v685
    %713 = vmatprep.subr.mxu0 0.0
    %714 = vmatpush1.msra.mxu0 %v686
    %715 = vmatprep.subr.mxu0 0.0
    %716 = vmatpush1.msra.mxu0 %v687
    %717 = vmatprep.subr.mxu0 0.0
    %718 = vmatpush1.msra.mxu0 %v688
    %719 = vmatprep.subr.mxu0 0.0
    %720 = vmatpush1.msra.mxu0 %v689
    %721 = vmatprep.subr.mxu0 0.0
    %722 = vmatpush1.msra.mxu0 %v690
    %723 = vmatprep.subr.mxu0 0.0
    %724 = vmatpush1.msra.mxu0 %v691
    %725 = vmatprep.subr.mxu0 0.0
    %726 = vmatpush1.msra.mxu0 0.0
    %727 = vmatprep.subr.mxu0 0.0
    %728 = vmatpush1.msra.mxu0 0.0
    %729 = vmatprep.subr.mxu0 0.0
    %730 = vmatpush1.msra.mxu0 0.0
    %731 = vmatprep.subr.mxu0 0.0
    %732 = vmatpush1.msra.mxu0 0.0
    %733 = vmatprep.subr.mxu0 0.0
    %734 = vmatpush1.msra.mxu0 0.0
    %735 = vmatprep.subr.mxu0 0.0
    %736 = vmatpush1.msra.mxu0 0.0
    %737 = vmatprep.subr.mxu0 0.0
    %738 = vmatpush1.msra.mxu0 0.0
    %739 = vmatprep.subr.mxu0 0.0
    %740 = vmatpush1.msra.mxu0 0.0
    %741 = vmatprep.subr.mxu0 0.0
    %742 = vmatpush1.msra.mxu0 0.0
    %743 = vmatprep.subr.mxu0 0.0
    %744 = vmatpush1.msra.mxu0 0.0
    %745 = vmatprep.subr.mxu0 0.0
    %746 = vmatpush1.msra.mxu0 0.0
    %747 = vmatprep.subr.mxu0 0.0
    %748 = vmatpush1.msra.mxu0 0.0
    %749 = vmatprep.subr.mxu0 0.0
    %750 = vmatpush1.msra.mxu0 0.0
    %751 = vmatprep.subr.mxu0 0.0
    %752 = vmatpush1.msra.mxu0 0.0
    %753 = vmatprep.subr.mxu0 0.0
    %754 = vmatpush1.msra.mxu0 0.0
    %755 = vmatprep.subr.mxu0 0.0
    %756 = vmatpush1.msra.mxu0 0.0
    %757 = vmatprep.mubr.f32.mxu0 0.0
    %758 = vmatmul.mubr.f32.gmra.mrb[0].mxu0 %v675
    %v759 = vpop.f32.mrb[0].mxu0
    %v760 = vadd.f32 %v692, %v759
    %v761 = vpop.f32.mrb[0].mxu0
    %762 = vdwg.mxu0
    %v763 = vld [vmem:[%s7 + $0x13] ss:$0 sm:$0xff]
    %v764 = vld [vmem:[%s7 + $0x14] ss:$0 sm:$0xff]
    %765 = vadd.xlane.f32.xlu0 %v760
    %v766 = vpop.xlane.xlu0 %765
    %v767 = vmul.f32 %v766, 0.03125
    %v768 = vsub.f32 %v760, %v767
    %v769 = vmul.f32 %v768, %v768
    %770 = vadd.xlane.f32.xlu0 %v769
    %v771 = vpop.xlane.xlu0 %770
    %v772 = vmul.f32 %v767, %v767
    %v773 = vmul.f32 %v772, 96.0
    %v774 = vsub.f32 %v771, %v773
    %v775 = vmul.f32 %v774, 0.03125
    %v776 = vadd.f32 %v775, 1e-05
    %v777 = vrsqrt.pop %v776
    %v778 = vmul.f32 %v768, %v777
    %v779 = vmul.f32 %v778, %v763
    %v780 = vadd.f32 %v779, %v764
    %vm781 = vcmp.gt.f32.partialorder %v780, 0.0
    %v782 = vmin.f32 %v780, 0.0
    %v783 = vmul.f32 %v782, 1.442695
    %v784 = vpow.pop %v783
    %v785 = vsub.f32 %v784, 1.0
    %v786 = vsel %vm781, %v780, %v785
    %v787 = vld [vmem:[#allocation11] sm:$0xff]
    %v788 = vld [vmem:[#allocation11 + $0x8] sm:$0xff]
    %v789 = vld [vmem:[#allocation11 + $0x10] sm:$0xff]
    %v790 = vld [vmem:[#allocation11 + $0x18] sm:$0xff]
    %v791 = vld [vmem:[#allocation11 + $0x20] sm:$0xff]
    %v792 = vld [vmem:[#allocation11 + $0x28] sm:$0xff]
    %v793 = vld [vmem:[#allocation11 + $0x30] sm:$0xff]
    %v794 = vld [vmem:[#allocation11 + $0x38] sm:$0xff]
    %v795 = vld [vmem:[#allocation11 + $0x40] sm:$0xff]
    %v796 = vld [vmem:[#allocation11 + $0x48] sm:$0xff]
    %v797 = vld [vmem:[#allocation11 + $0x50] sm:$0xff]
    %v798 = vld [vmem:[#allocation11 + $0x58] sm:$0xff]
    %v799 = vld [vmem:[#allocation11 + $0x60] sm:$0xff]
    %v800 = vld [vmem:[#allocation11 + $0x68] sm:$0xff]
    %v801 = vld [vmem:[#allocation11 + $0x70] sm:$0xff]
    %v802 = vld [vmem:[#allocation11 + $0x78] sm:$0xff]
    %v803 = vld [vmem:[%s7 + $0x15] ss:$0 sm:$0xff]
    %804 = vmatprep.subr.mxu0 0.0
    %805 = vmatpush1.msra.mxu0 %v787
    %806 = vmatprep.subr.mxu0 0.0
    %807 = vmatpush1.msra.mxu0 %v788
    %808 = vmatprep.subr.mxu0 0.0
    %809 = vmatpush1.msra.mxu0 %v789
    %810 = vmatprep.subr.mxu0 0.0
    %811 = vmatpush1.msra.mxu0 %v790
    %812 = vmatprep.subr.mxu0 0.0
    %813 = vmatpush1.msra.mxu0 %v791
    %814 = vmatprep.subr.mxu0 0.0
    %815 = vmatpush1.msra.mxu0 %v792
    %816 = vmatprep.subr.mxu0 0.0
    %817 = vmatpush1.msra.mxu0 %v793
    %818 = vmatprep.subr.mxu0 0.0
    %819 = vmatpush1.msra.mxu0 %v794
    %820 = vmatprep.subr.mxu0 0.0
    %821 = vmatpush1.msra.mxu0 %v795
    %822 = vmatprep.subr.mxu0 0.0
    %823 = vmatpush1.msra.mxu0 %v796
    %824 = vmatprep.subr.mxu0 0.0
    %825 = vmatpush1.msra.mxu0 %v797
    %826 = vmatprep.subr.mxu0 0.0
    %827 = vmatpush1.msra.mxu0 %v798
    %828 = vmatprep.subr.mxu0 0.0
    %829 = vmatpush1.msra.mxu0 %v799
    %830 = vmatprep.subr.mxu0 0.0
    %831 = vmatpush1.msra.mxu0 %v800
    %832 = vmatprep.subr.mxu0 0.0
    %833 = vmatpush1.msra.mxu0 %v801
    %834 = vmatprep.subr.mxu0 0.0
    %835 = vmatpush1.msra.mxu0 %v802
    %836 = vmatprep.subr.mxu0 0.0
    %837 = vmatpush1.msra.mxu0 0.0
    %838 = vmatprep.subr.mxu0 0.0
    %839 = vmatpush1.msra.mxu0 0.0
    %840 = vmatprep.subr.mxu0 0.0
    %841 = vmatpush1.msra.mxu0 0.0
    %842 = vmatprep.subr.mxu0 0.0
    %843 = vmatpush1.msra.mxu0 0.0
    %844 = vmatprep.subr.mxu0 0.0
    %845 = vmatpush1.msra.mxu0 0.0
    %846 = vmatprep.subr.mxu0 0.0
    %847 = vmatpush1.msra.mxu0 0.0
    %848 = vmatprep.subr.mxu0 0.0
    %849 = vmatpush1.msra.mxu0 0.0
    %850 = vmatprep.subr.mxu0 0.0
    %851 = vmatpush1.msra.mxu0 0.0
    %852 = vmatprep.subr.mxu0 0.0
    %853 = vmatpush1.msra.mxu0 0.0
    %854 = vmatprep.subr.mxu0 0.0
    %855 = vmatpush1.msra.mxu0 0.0
    %856 = vmatprep.subr.mxu0 0.0
    %857 = vmatpush1.msra.mxu0 0.0
    %858 = vmatprep.subr.mxu0 0.0
    %859 = vmatpush1.msra.mxu0 0.0
    %860 = vmatprep.subr.mxu0 0.0
    %861 = vmatpush1.msra.mxu0 0.0
    %862 = vmatprep.subr.mxu0 0.0
    %863 = vmatpush1.msra.mxu0 0.0
    %864 = vmatprep.subr.mxu0 0.0
    %865 = vmatpush1.msra.mxu0 0.0
    %866 = vmatprep.subr.mxu0 0.0
    %867 = vmatpush1.msra.mxu0 0.0
    %868 = vmatprep.mubr.f32.mxu0 0.0
    %869 = vmatmul.mubr.f32.gmra.mrb[0].mxu0 %v786
    %v870 = vpop.f32.mrb[0].mxu0
    %v871 = vadd.f32 %v803, %v870
    %v872 = vpop.f32.mrb[0].mxu0
    %873 = vdwg.mxu0
    %874 = vst [vmem:[#allocation13] sm:$0xff] %v871
    %875 = vst [vmem:[#allocation14] sm:$0xff] %v469
    %876 = vst [vmem:[#allocation16] sm:$0xff] %v471
    // Predicated region
    $region58: #{_fwd.1} parent=1 // pred_check
      _
    $region59: #{_fwd.1} parent=1 // pred_check_branch
      %878 = sbr.rel (0) target = $region61
    $region60: #{_fwd.1} parent=1 // pred_region
      %s880 = ssub.s32 128, 128
      %881 = vsyncadd [#allocation4], %s880
      %s883 = sshll.u32 [#allocation13], 4
      %s884 = int_to_ptr.vmem [resolvable:$true] %s883
      %886 = dma.vmem_to_hbm [thread:$0]  %s884, 128, %s8, [#allocation4]
    $region61: #{_fwd.1} parent=1 // pred_fallthru
      _
    // Predicated region
    $region62: #{_fwd.1} parent=1 // pred_check
      _
    $region63: #{_fwd.1} parent=1 // pred_check_branch
      %888 = sbr.rel (0) target = $region65
    $region64: #{_fwd.1} parent=1 // pred_region
      %s890 = ssub.s32 128, 128
      %891 = vsyncadd [#allocation15], %s890
      %s893 = sshll.u32 [#allocation14], 4
      %s894 = int_to_ptr.vmem [resolvable:$true] %s893
      %896 = dma.vmem_to_hbm [thread:$0]  %s894, 128, %s9, [#allocation15]
    $region65: #{_fwd.1} parent=1 // pred_fallthru
      _
    // Predicated region
    $region66: #{_fwd.1} parent=1 // pred_check
      _
    $region67: #{_fwd.1} parent=1 // pred_check_branch
      %898 = sbr.rel (0) target = $region69
    $region68: #{_fwd.1} parent=1 // pred_region
      %s900 = ssub.s32 128, 128
      %901 = vsyncadd [#allocation15], %s900
      %s903 = sshll.u32 [#allocation16], 4
      %s904 = int_to_ptr.vmem [resolvable:$true] %s903
      %906 = dma.vmem_to_hbm [thread:$0]  %s904, 128, %s10, [#allocation15]
    $region69: #{_fwd.1} parent=1 // pred_fallthru
      _
    // Predicated region
    $region70: #{_fwd.1} parent=1 // pred_check
      _
    $region71: #{_fwd.1} parent=1 // pred_check_branch
      %908 = sbr.rel (0) target = $region73
    $region72: #{_fwd.1} parent=1 // pred_region
      %909 = dma.done [#allocation4], 128
    $region73: #{_fwd.1} parent=1 // pred_fallthru
      _
    // Predicated region
    $region74: #{_fwd.1} parent=1 // pred_check
      _
    $region75: #{_fwd.1} parent=1 // pred_check_branch
      %911 = sbr.rel (0) target = $region77
    $region76: #{_fwd.1} parent=1 // pred_region
      %912 = dma.done [#allocation15], 128
    $region77: #{_fwd.1} parent=1 // pred_fallthru
      _
    // Predicated region
    $region78: #{_fwd.1} parent=1 // pred_check
      _
    $region79: #{_fwd.1} parent=1 // pred_check_branch
      %914 = sbr.rel (0) target = $region81
    $region80: #{_fwd.1} parent=1 // pred_region
      %915 = dma.done [#allocation15], 128
    $region81: #{_fwd.1} parent=1 // pred_fallthru
      _
    %916 = vsyncpa [#allocation3], 1
    %917 = vsyncpa [#allocation6], 1
    %918 = vsyncpa [#allocation9], 1
    %919 = vsyncpa [#allocation12], 1
    %920 = vsyncpa [#allocation4], 1
    %921 = vsyncpa [#allocation15], 1

</llo_original>
